<compile_context>
chip_gen: v5e
topology: v5e:2x2
jax: 0.10.0
libtpu: 0.0.40
codegen_flags: <defaults>
</compile_context>

<pallas_src>
import functools

import jax
import jax.numpy as jnp
from jax.experimental import pallas as pl
from jax.experimental.pallas import tpu as pltpu

LANE = 128
SUBLANE = 8


def _round_up(v, m):
    return (v + m - 1) // m * m


# ----------------------------------------------------------------------------
# Fused kernel: all GIN layers + global_add_pool + head MLP
# ----------------------------------------------------------------------------
def _make_kernel(num_layers, tm):
    def kernel(eps_ref,                                   # SMEM (L,)  GINConv eps
               adj_ref, x_in_ref, pool_ref,               # resident VMEM blocks
               w1_ref, b1_ref, w2_ref, b2_ref,            # per-layer (streamed on l)
               w3_ref, b3_ref, w4_ref, b4_ref,            # head (resident)
               out_ref,
               x_a, x_b):                                 # VMEM ping-pong activations
        l = pl.program_id(0)
        i = pl.program_id(1)
        n_tiles = pl.num_programs(1)

        # Stage the (padded) input node features into buffer A exactly once.
        @pl.when(jnp.logical_and(l == 0, i == 0))
        def _():
            x_a[...] = x_in_ref[...]

        r0 = pl.multiple_of(i * tm, tm)
        rows = pl.ds(r0, tm)

        def layer_tile(src, dst):
            # GINConv aggregation for this row tile: (1 + eps) * x + A @ x.
            # adj is bf16 (exact for edge multiplicities); f32 accumulation on MXU.
            x_full = src[...]
            agg = jnp.dot(adj_ref[rows, :],
                          x_full.astype(jnp.bfloat16),
                          preferred_element_type=jnp.float32)
            h = (1.0 + eps_ref[l]) * src[rows, :] + agg
            # mlp: Linear -> BatchNorm (folded into W1/b1) -> ReLU
            z = jnp.maximum(
                jnp.dot(h, w1_ref[0], preferred_element_type=jnp.float32)
                + b1_ref[0], 0.0)
            # mlp second Linear, then outer per-layer BatchNorm (folded) + ReLU
            z = jnp.maximum(
                jnp.dot(z, w2_ref[0], preferred_element_type=jnp.float32)
                + b2_ref[0], 0.0)
            dst[rows, :] = z

        # Ping-pong activation buffers across layers (static refs, no dynamic
        # leading-axis indexing of scratch).
        @pl.when(l % 2 == 0)
        def _():
            layer_tile(x_a, x_b)

        @pl.when(l % 2 == 1)
        def _():
            layer_tile(x_b, x_a)

        # Fused head (global_add_pool + MLP) on the very last grid step; the final
        # activations are fully resident in the last-written scratch buffer.
        @pl.when(jnp.logical_and(l == num_layers - 1, i == n_tiles - 1))
        def _():
            final = x_b if (num_layers % 2 == 1) else x_a
            g = jnp.dot(pool_ref[...], final[...],
                        preferred_element_type=jnp.float32)
            z = jnp.maximum(
                jnp.dot(g, w3_ref[...], preferred_element_type=jnp.float32)
                + b3_ref[...], 0.0)
            # TODO(synk): nn.Dropout(0.5) is identity here (eval-mode semantics).
            out_ref[...] = (jnp.dot(z, w4_ref[...],
                                    preferred_element_type=jnp.float32)
                            + b4_ref[...])

    return kernel


def gin_fused(eps, adj, x_pad, pool, p, *, num_layers, tm):
    npad, feat = x_pad.shape
    gpad = pool.shape[0]
    h2 = p["w1"].shape[2]
    opad = p["w4"].shape[1]
    assert npad % tm == 0
    n_tiles = npad // tm

    flops = (num_layers * (2 * npad * npad * feat
                           + 2 * npad * feat * h2
                           + 2 * npad * h2 * feat)
             + 2 * gpad * npad * feat
             + 2 * gpad * feat * feat
             + 2 * gpad * feat * opad)
    weight_bytes = sum(int(p[k].size) * 4
                       for k in ("w1", "b1", "w2", "b2", "w3", "b3", "w4", "b4"))
    bytes_accessed = (int(adj.size) * 2            # bf16 adjacency, read once
                      + int(x_pad.size) * 4
                      + int(pool.size) * 4
                      + weight_bytes
                      + gpad * opad * 4)

    grid_spec = pltpu.PrefetchScalarGridSpec(
        num_scalar_prefetch=1,                     # eps -> SMEM
        grid=(num_layers, n_tiles),
        in_specs=[
            # adjacency / input features / pooling matrix: resident (DMA'd once).
            pl.BlockSpec((npad, npad), lambda l, i, eps: (0, 0)),
            pl.BlockSpec((npad, feat), lambda l, i, eps: (0, 0)),
            pl.BlockSpec((gpad, npad), lambda l, i, eps: (0, 0)),
            # per-layer GIN MLP weights (BN folded), streamed by layer index.
            pl.BlockSpec((1, feat, h2), lambda l, i, eps: (l, 0, 0)),
            pl.BlockSpec((1, 1, h2),    lambda l, i, eps: (l, 0, 0)),
            pl.BlockSpec((1, h2, feat), lambda l, i, eps: (l, 0, 0)),
            pl.BlockSpec((1, 1, feat),  lambda l, i, eps: (l, 0, 0)),
            # head weights: resident.
            pl.BlockSpec((feat, feat), lambda l, i, eps: (0, 0)),
            pl.BlockSpec((1, feat),    lambda l, i, eps: (0, 0)),
            pl.BlockSpec((feat, opad), lambda l, i, eps: (0, 0)),
            pl.BlockSpec((1, opad),    lambda l, i, eps: (0, 0)),
        ],
        out_specs=pl.BlockSpec((gpad, opad), lambda l, i, eps: (0, 0)),
        scratch_shapes=[pltpu.VMEM((npad, feat), jnp.float32),
                        pltpu.VMEM((npad, feat), jnp.float32)],
    )

    return pl.pallas_call(
        _make_kernel(num_layers, tm),
        out_shape=jax.ShapeDtypeStruct((gpad, opad), jnp.float32),
        grid_spec=grid_spec,
        compiler_params=pltpu.CompilerParams(
            # Both axes "arbitrary": cross-layer / cross-tile dependencies flow
            # through the resident VMEM scratch buffers.
            dimension_semantics=("arbitrary", "arbitrary"),
            # Budgeted for v7x's 64 MiB physical VMEM (leave headroom).
            vmem_limit_bytes=48 * 1024 * 1024,
        ),
        cost_estimate=pl.CostEstimate(flops=flops, transcendentals=0,
                                      bytes_accessed=bytes_accessed),
    )(eps, adj, x_pad, pool,
      p["w1"], p["b1"], p["w2"], p["b2"],
      p["w3"], p["b3"], p["w4"], p["b4"])


# ----------------------------------------------------------------------------
# Parameters: PyTorch-default-style init, BN folded, padded to 128-lane widths
# ----------------------------------------------------------------------------
def _linear_params(key, fan_in, fan_out):
    k1, k2 = jax.random.split(key)
    bound = 1.0 / jnp.sqrt(float(fan_in))
    # stored transposed: (fan_in, fan_out), kernels compute x @ W
    w = jax.random.uniform(k1, (fan_in, fan_out), jnp.float32, -bound, bound)
    b = jax.random.uniform(k2, (fan_out,), jnp.float32, -bound, bound)
    return w, b


def _bn_affine(c, eps=1e-5):
    # PyTorch BatchNorm1d eval-mode defaults: gamma=1, beta=0, mean=0, var=1
    gamma = jnp.ones((c,), jnp.float32)
    beta = jnp.zeros((c,), jnp.float32)
    running_mean = jnp.zeros((c,), jnp.float32)
    running_var = jnp.ones((c,), jnp.float32)
    scale = gamma / jnp.sqrt(running_var + eps)
    shift = beta - running_mean * scale
    return scale, shift


def _fold_bn(w, b, scale, shift):
    # (x @ w + b) * scale + shift  ==  x @ (w * scale) + (b * scale + shift)
    return w * scale[None, :], b * scale + shift


def _pad2(a, rows, cols):
    return jnp.zeros((rows, cols), a.dtype).at[:a.shape[0], :a.shape[1]].set(a)


def make_gin_params(key, in_channels, hidden_channels, out_channels, num_layers):
    feat = _round_up(max(in_channels, hidden_channels), LANE)
    h2 = _round_up(2 * hidden_channels, LANE)
    opad = _round_up(out_channels, LANE)

    w1s, b1s, w2s, b2s, epss = [], [], [], [], []
    c_in = in_channels
    for _ in range(num_layers):
        key, k1, k2 = jax.random.split(key, 3)
        w1, b1 = _linear_params(k1, c_in, 2 * hidden_channels)
        s1, t1 = _bn_affine(2 * hidden_channels)
        w1, b1 = _fold_bn(w1, b1, s1, t1)                 # mlp inner BN folded
        w2, b2 = _linear_params(k2, 2 * hidden_channels, hidden_channels)
        s2, t2 = _bn_affine(hidden_channels)
        w2, b2 = _fold_bn(w2, b2, s2, t2)                 # outer per-layer BN folded
        w1s.append(_pad2(w1, feat, h2))
        b1s.append(_pad2(b1[None, :], 1, h2))
        w2s.append(_pad2(w2, h2, feat))
        b2s.append(_pad2(b2[None, :], 1, feat))
        epss.append(jnp.zeros((), jnp.float32))           # GINConv(train_eps=True) init
        c_in = hidden_channels

    key, k3, k4 = jax.random.split(key, 3)
    w3, b3 = _linear_params(k3, hidden_channels, hidden_channels)
    s3, t3 = _bn_affine(hidden_channels)
    w3, b3 = _fold_bn(w3, b3, s3, t3)                     # head BN folded
    w4, b4 = _linear_params(k4, hidden_channels, out_channels)

    params = dict(
        eps=jnp.stack(epss),                              # (L,)
        w1=jnp.stack(w1s), b1=jnp.stack(b1s),             # (L, feat, h2), (L, 1, h2)
        w2=jnp.stack(w2s), b2=jnp.stack(b2s),             # (L, h2, feat), (L, 1, feat)
        w3=_pad2(w3, feat, feat), b3=_pad2(b3[None, :], 1, feat),
        w4=_pad2(w4, feat, opad), b4=_pad2(b4[None, :], 1, opad),
    )
    meta = dict(feat=feat, out_channels=out_channels, num_layers=num_layers)
    return params, meta


# ----------------------------------------------------------------------------
# Full forward (glue in plain JAX, all hot compute in the fused Pallas kernel)
# ----------------------------------------------------------------------------
def gin_forward(x, edge_index, batch, params, meta, num_graphs, tm=256):
    n, in_c = x.shape
    feat = meta["feat"]
    num_layers = meta["num_layers"]

    npad = _round_up(max(n, LANE), LANE)
    tm = min(tm, npad)
    npad = _round_up(npad, tm)                            # tm divides npad
    gpad = _round_up(max(num_graphs, SUBLANE), SUBLANE)

    # padded node features (extra rows / channels are zero)
    x_pad = jnp.zeros((npad, feat), jnp.float32).at[:n, :in_c].set(x)

    # dense adjacency: A[dst, src] += 1 => (A @ x)[i] = sum_{j -> i} x[j]; stored bf16
    src, dst = edge_index[0], edge_index[1]
    adj = (jnp.zeros((npad, npad), jnp.float32)
           .at[dst, src].add(1.0)
           .astype(jnp.bfloat16))

    # one-hot pooling matrix: P[g, i] = 1 iff batch[i] == g (padded nodes excluded)
    batch_pad = jnp.full((npad,), -1, jnp.int32).at[:n].set(batch.astype(jnp.int32))
    pool = (batch_pad[None, :] == jnp.arange(gpad, dtype=jnp.int32)[:, None]
            ).astype(jnp.float32)

    out_pad = gin_fused(params["eps"], adj, x_pad, pool, params,
                        num_layers=num_layers, tm=tm)
    return out_pad[:num_graphs, :meta["out_channels"]]


if __name__ == "__main__":
    # Small deterministic example
    N = 16                  # nodes
    IN_C = 8                # in_channels
    HID = 16                # hidden_channels
    OUT_C = 4               # out_channels
    NUM_LAYERS = 2
    NUM_GRAPHS = 2

    key = jax.random.PRNGKey(0)
    key, kx, kp = jax.random.split(key, 3)

    x = jax.random.normal(kx, (N, IN_C), jnp.float32)

    # bidirectional ring graph
    s = jnp.arange(N, dtype=jnp.int32)
    d = (s + 1) % N
    edge_index = jnp.stack([jnp.concatenate([s, d]),
                            jnp.concatenate([d, s])], axis=0)

    # first half of nodes -> graph 0, second half -> graph 1
    batch = jnp.concatenate([jnp.zeros(N // 2, jnp.int32),
                             jnp.ones(N - N // 2, jnp.int32)])

    params, meta = make_gin_params(kp, IN_C, HID, OUT_C, NUM_LAYERS)

    # tm=64 so the padded node dim (128) splits into 2 row tiles -> grid (2, 2),
    # exercising the tiled / multi-layer fused paths.
    fwd = jax.jit(functools.partial(gin_forward, meta=meta,
                                    num_graphs=NUM_GRAPHS, tm=64))
    out = fwd(x, edge_index, batch, params)
    jax.block_until_ready(out)

    assert out.shape == (NUM_GRAPHS, OUT_C), out.shape
    assert bool(jnp.all(jnp.isfinite(out)))
    print("KERNEL_OK")
</pallas_src>

<mosaic_0001>
module attributes {stable_mosaic.version = 11 : i64} {
  func.func @kernel(%arg0: i32, %arg1: i32, %arg2: memref<2xf32, #tpu.memory_space<smem>>, %arg3: memref<128x128xbf16, #tpu.memory_space<vmem>>, %arg4: memref<128x128xf32, #tpu.memory_space<vmem>>, %arg5: memref<8x128xf32, #tpu.memory_space<vmem>>, %arg6: memref<1x128x128xf32, #tpu.memory_space<vmem>>, %arg7: memref<1x1x128xf32, #tpu.memory_space<vmem>>, %arg8: memref<1x128x128xf32, #tpu.memory_space<vmem>>, %arg9: memref<1x1x128xf32, #tpu.memory_space<vmem>>, %arg10: memref<128x128xf32, #tpu.memory_space<vmem>>, %arg11: memref<1x128xf32, #tpu.memory_space<vmem>>, %arg12: memref<128x128xf32, #tpu.memory_space<vmem>>, %arg13: memref<1x128xf32, #tpu.memory_space<vmem>>, %arg14: memref<8x128xf32, #tpu.memory_space<vmem>>, %arg15: memref<128x128xf32, #tpu.memory_space<vmem>>, %arg16: memref<128x128xf32, #tpu.memory_space<vmem>>) attributes {dimension_semantics = [#tpu.dimension_semantics<arbitrary>, #tpu.dimension_semantics<arbitrary>], iteration_bounds = array<i64: 2, 2>, scalar_prefetch = 1 : i64, scratch_operands = 2 : i64, tpu.core_type = #tpu.core_type<tc>, window_params = [{pipeline_mode = #tpu.pipeline_mode<synchronous>, transform_indices = @transform_0, window_bounds = array<i64: 128, 128>}, {pipeline_mode = #tpu.pipeline_mode<synchronous>, transform_indices = @transform_1, window_bounds = array<i64: 128, 128>}, {pipeline_mode = #tpu.pipeline_mode<synchronous>, transform_indices = @transform_2, window_bounds = array<i64: 8, 128>}, {transform_indices = @transform_3, window_bounds = array<i64: 1, 128, 128>}, {transform_indices = @transform_4, window_bounds = array<i64: 1, 1, 128>}, {transform_indices = @transform_5, window_bounds = array<i64: 1, 128, 128>}, {transform_indices = @transform_6, window_bounds = array<i64: 1, 1, 128>}, {pipeline_mode = #tpu.pipeline_mode<synchronous>, transform_indices = @transform_7, window_bounds = array<i64: 128, 128>}, {pipeline_mode = #tpu.pipeline_mode<synchronous>, transform_indices = @transform_8, window_bounds = array<i64: 1, 128>}, {pipeline_mode = #tpu.pipeline_mode<synchronous>, transform_indices = @transform_9, window_bounds = array<i64: 128, 128>}, {pipeline_mode = #tpu.pipeline_mode<synchronous>, transform_indices = @transform_10, window_bounds = array<i64: 1, 128>}, {pipeline_mode = #tpu.pipeline_mode<synchronous>, transform_indices = @transform_11, window_bounds = array<i64: 8, 128>}]} {
    %c0_i32 = arith.constant 0 : i32
    %0 = arith.cmpi eq, %arg0, %c0_i32 : i32
    %c0_i32_0 = arith.constant 0 : i32
    %1 = arith.cmpi eq, %arg1, %c0_i32_0 : i32
    %2 = arith.andi %0, %1 : i1
    %3 = arith.extui %2 : i1 to i32
    %c0_i32_1 = arith.constant 0 : i32
    %4 = arith.cmpi ne, %3, %c0_i32_1 : i32
    scf.if %4 {
      %c0 = arith.constant 0 : index
      %c0_19 = arith.constant 0 : index
      %38 = vector.load %arg4[%c0, %c0_19] : memref<128x128xf32, #tpu.memory_space<vmem>>, vector<128x128xf32>
      %c0_20 = arith.constant 0 : index
      %c0_21 = arith.constant 0 : index
      %39 = vector.load %arg15[%c0_20, %c0_21] : memref<128x128xf32, #tpu.memory_space<vmem>>, vector<128x128xf32>
      tpu.vector_store %arg15[%c0_20, %c0_21], %38 {strides = array<i32>} : memref<128x128xf32, #tpu.memory_space<vmem>>, vector<128x128xf32>,
    } else {
    }
    %c64_i32 = arith.constant 64 : i32
    %5 = arith.muli %arg1, %c64_i32 : i32
    %6 = tpu.assume_multiple %5, 64 : i32
    %c2_i32 = arith.constant 2 : i32
    %c0_i32_2 = arith.constant 0 : i32
    %7 = arith.cmpi eq, %c2_i32, %c0_i32_2 : i32
    %c1_i32 = arith.constant 1 : i32
    %8 = arith.select %7, %c1_i32, %c2_i32 : i32
    %9 = arith.remsi %arg0, %8 : i32
    %c0_i32_3 = arith.constant 0 : i32
    %10 = arith.cmpi ne, %9, %c0_i32_3 : i32
    %c0_i32_4 = arith.constant 0 : i32
    %11 = arith.cmpi slt, %9, %c0_i32_4 : i32
    %c0_i32_5 = arith.constant 0 : i32
    %12 = arith.cmpi slt, %8, %c0_i32_5 : i32
    %13 = arith.xori %11, %12 : i1
    %14 = arith.andi %13, %10 : i1
    %15 = arith.addi %9, %8 : i32
    %16 = arith.select %14, %15, %9 : i32
    %c0_i32_6 = arith.constant 0 : i32
    %17 = arith.cmpi eq, %16, %c0_i32_6 : i32
    %18 = arith.extui %17 : i1 to i32
    %c0_i32_7 = arith.constant 0 : i32
    %19 = arith.cmpi ne, %18, %c0_i32_7 : i32
    scf.if %19 {
      %c0 = arith.constant 0 : index
      %c0_19 = arith.constant 0 : index
      %38 = vector.load %arg15[%c0, %c0_19] : memref<128x128xf32, #tpu.memory_space<vmem>>, vector<128x128xf32>
      %39 = arith.index_cast %6 : i32 to index
      %c0_20 = arith.constant 0 : index
      %40 = vector.load %arg3[%39, %c0_20] : memref<128x128xbf16, #tpu.memory_space<vmem>>, vector<64x128xbf16>
      %41 = arith.truncf %38 : vector<128x128xf32> to vector<128x128xbf16>
      %cst = arith.constant dense<0.000000e+00> : vector<64x128xf32>
      %42 = tpu.matmul %40, %41, %cst {dimension_numbers = #tpu.dot_dimension_numbers<[1], [0], [0], [1], [0, 0, 1, 1], [], []>} : vector<64x128xbf16>, vector<128x128xbf16>, vector<64x128xf32> -> vector<64x128xf32>
      %43 = arith.index_cast %arg0 : i32 to index
      %44 = memref.load %arg2[%43] : memref<2xf32, #tpu.memory_space<smem>>
      %cst_21 = arith.constant 1.000000e+00 : f32
      %45 = arith.addf %cst_21, %44 : f32
      %46 = arith.index_cast %6 : i32 to index
      %c0_22 = arith.constant 0 : index
      %47 = vector.load %arg15[%46, %c0_22] : memref<128x128xf32, #tpu.memory_space<vmem>>, vector<64x128xf32>
      %48 = vector.broadcast %45 : f32 to vector<64x128xf32>
      %49 = arith.mulf %48, %47 : vector<64x128xf32>
      %50 = arith.addf %49, %42 : vector<64x128xf32>
      %c0_23 = arith.constant 0 : index
      %c0_24 = arith.constant 0 : index
      %c0_25 = arith.constant 0 : index
      %51 = vector.load %arg6[%c0_23, %c0_24, %c0_25] : memref<1x128x128xf32, #tpu.memory_space<vmem>>, vector<1x128x128xf32>
      %52 = vector.shape_cast %51 : vector<1x128x128xf32> to vector<128x128xf32>
      %cst_26 = arith.constant dense<0.000000e+00> : vector<64x128xf32>
      %53 = tpu.matmul %50, %52, %cst_26 {dimension_numbers = #tpu.dot_dimension_numbers<[1], [0], [0], [1], [0, 0, 1, 1], [], []>} : vector<64x128xf32>, vector<128x128xf32>, vector<64x128xf32> -> vector<64x128xf32>
      %c0_27 = arith.constant 0 : index
      %c0_28 = arith.constant 0 : index
      %c0_29 = arith.constant 0 : index
      %54 = vector.load %arg7[%c0_27, %c0_28, %c0_29] : memref<1x1x128xf32, #tpu.memory_space<vmem>>, vector<1x1x128xf32>
      %55 = vector.shape_cast %54 : vector<1x1x128xf32> to vector<1x128xf32>
      %56 = vector.broadcast %55 : vector<1x128xf32> to vector<64x128xf32>
      %57 = arith.addf %53, %56 : vector<64x128xf32>
      %cst_30 = arith.constant 0.000000e+00 : f32
      %58 = vector.broadcast %cst_30 : f32 to vector<64x128xf32>
      %59 = arith.maximumf %57, %58 : vector<64x128xf32>
      %c0_31 = arith.constant 0 : index
      %c0_32 = arith.constant 0 : index
      %c0_33 = arith.constant 0 : index
      %60 = vector.load %arg8[%c0_31, %c0_32, %c0_33] : memref<1x128x128xf32, #tpu.memory_space<vmem>>, vector<1x128x128xf32>
      %61 = vector.shape_cast %60 : vector<1x128x128xf32> to vector<128x128xf32>
      %cst_34 = arith.constant dense<0.000000e+00> : vector<64x128xf32>
      %62 = tpu.matmul %59, %61, %cst_34 {dimension_numbers = #tpu.dot_dimension_numbers<[1], [0], [0], [1], [0, 0, 1, 1], [], []>} : vector<64x128xf32>, vector<128x128xf32>, vector<64x128xf32> -> vector<64x128xf32>
      %c0_35 = arith.constant 0 : index
      %c0_36 = arith.constant 0 : index
      %c0_37 = arith.constant 0 : index
      %63 = vector.load %arg9[%c0_35, %c0_36, %c0_37] : memref<1x1x128xf32, #tpu.memory_space<vmem>>, vector<1x1x128xf32>
      %64 = vector.shape_cast %63 : vector<1x1x128xf32> to vector<1x128xf32>
      %65 = vector.broadcast %64 : vector<1x128xf32> to vector<64x128xf32>
      %66 = arith.addf %62, %65 : vector<64x128xf32>
      %cst_38 = arith.constant 0.000000e+00 : f32
      %67 = vector.broadcast %cst_38 : f32 to vector<64x128xf32>
      %68 = arith.maximumf %66, %67 : vector<64x128xf32>
      %69 = arith.index_cast %6 : i32 to index
      %c0_39 = arith.constant 0 : index
      %70 = vector.load %arg16[%69, %c0_39] : memref<128x128xf32, #tpu.memory_space<vmem>>, vector<64x128xf32>
      tpu.vector_store %arg16[%69, %c0_39], %68 {strides = array<i32>} : memref<128x128xf32, #tpu.memory_space<vmem>>, vector<64x128xf32>,
    } else {
    }
    %c2_i32_8 = arith.constant 2 : i32
    %c0_i32_9 = arith.constant 0 : i32
    %20 = arith.cmpi eq, %c2_i32_8, %c0_i32_9 : i32
    %c1_i32_10 = arith.constant 1 : i32
    %21 = arith.select %20, %c1_i32_10, %c2_i32_8 : i32
    %22 = arith.remsi %arg0, %21 : i32
    %c0_i32_11 = arith.constant 0 : i32
    %23 = arith.cmpi ne, %22, %c0_i32_11 : i32
    %c0_i32_12 = arith.constant 0 : i32
    %24 = arith.cmpi slt, %22, %c0_i32_12 : i32
    %c0_i32_13 = arith.constant 0 : i32
    %25 = arith.cmpi slt, %21, %c0_i32_13 : i32
    %26 = arith.xori %24, %25 : i1
    %27 = arith.andi %26, %23 : i1
    %28 = arith.addi %22, %21 : i32
    %29 = arith.select %27, %28, %22 : i32
    %c1_i32_14 = arith.constant 1 : i32
    %30 = arith.cmpi eq, %29, %c1_i32_14 : i32
    %31 = arith.extui %30 : i1 to i32
    %c0_i32_15 = arith.constant 0 : i32
    %32 = arith.cmpi ne, %31, %c0_i32_15 : i32
    scf.if %32 {
      %c0 = arith.constant 0 : index
      %c0_19 = arith.constant 0 : index
      %38 = vector.load %arg16[%c0, %c0_19] : memref<128x128xf32, #tpu.memory_space<vmem>>, vector<128x128xf32>
      %39 = arith.index_cast %6 : i32 to index
      %c0_20 = arith.constant 0 : index
      %40 = vector.load %arg3[%39, %c0_20] : memref<128x128xbf16, #tpu.memory_space<vmem>>, vector<64x128xbf16>
      %41 = arith.truncf %38 : vector<128x128xf32> to vector<128x128xbf16>
      %cst = arith.constant dense<0.000000e+00> : vector<64x128xf32>
      %42 = tpu.matmul %40, %41, %cst {dimension_numbers = #tpu.dot_dimension_numbers<[1], [0], [0], [1], [0, 0, 1, 1], [], []>} : vector<64x128xbf16>, vector<128x128xbf16>, vector<64x128xf32> -> vector<64x128xf32>
      %43 = arith.index_cast %arg0 : i32 to index
      %44 = memref.load %arg2[%43] : memref<2xf32, #tpu.memory_space<smem>>
      %cst_21 = arith.constant 1.000000e+00 : f32
      %45 = arith.addf %cst_21, %44 : f32
      %46 = arith.index_cast %6 : i32 to index
      %c0_22 = arith.constant 0 : index
      %47 = vector.load %arg16[%46, %c0_22] : memref<128x128xf32, #tpu.memory_space<vmem>>, vector<64x128xf32>
      %48 = vector.broadcast %45 : f32 to vector<64x128xf32>
      %49 = arith.mulf %48, %47 : vector<64x128xf32>
      %50 = arith.addf %49, %42 : vector<64x128xf32>
      %c0_23 = arith.constant 0 : index
      %c0_24 = arith.constant 0 : index
      %c0_25 = arith.constant 0 : index
      %51 = vector.load %arg6[%c0_23, %c0_24, %c0_25] : memref<1x128x128xf32, #tpu.memory_space<vmem>>, vector<1x128x128xf32>
      %52 = vector.shape_cast %51 : vector<1x128x128xf32> to vector<128x128xf32>
      %cst_26 = arith.constant dense<0.000000e+00> : vector<64x128xf32>
      %53 = tpu.matmul %50, %52, %cst_26 {dimension_numbers = #tpu.dot_dimension_numbers<[1], [0], [0], [1], [0, 0, 1, 1], [], []>} : vector<64x128xf32>, vector<128x128xf32>, vector<64x128xf32> -> vector<64x128xf32>
      %c0_27 = arith.constant 0 : index
      %c0_28 = arith.constant 0 : index
      %c0_29 = arith.constant 0 : index
      %54 = vector.load %arg7[%c0_27, %c0_28, %c0_29] : memref<1x1x128xf32, #tpu.memory_space<vmem>>, vector<1x1x128xf32>
      %55 = vector.shape_cast %54 : vector<1x1x128xf32> to vector<1x128xf32>
      %56 = vector.broadcast %55 : vector<1x128xf32> to vector<64x128xf32>
      %57 = arith.addf %53, %56 : vector<64x128xf32>
      %cst_30 = arith.constant 0.000000e+00 : f32
      %58 = vector.broadcast %cst_30 : f32 to vector<64x128xf32>
      %59 = arith.maximumf %57, %58 : vector<64x128xf32>
      %c0_31 = arith.constant 0 : index
      %c0_32 = arith.constant 0 : index
      %c0_33 = arith.constant 0 : index
      %60 = vector.load %arg8[%c0_31, %c0_32, %c0_33] : memref<1x128x128xf32, #tpu.memory_space<vmem>>, vector<1x128x128xf32>
      %61 = vector.shape_cast %60 : vector<1x128x128xf32> to vector<128x128xf32>
      %cst_34 = arith.constant dense<0.000000e+00> : vector<64x128xf32>
      %62 = tpu.matmul %59, %61, %cst_34 {dimension_numbers = #tpu.dot_dimension_numbers<[1], [0], [0], [1], [0, 0, 1, 1], [], []>} : vector<64x128xf32>, vector<128x128xf32>, vector<64x128xf32> -> vector<64x128xf32>
      %c0_35 = arith.constant 0 : index
      %c0_36 = arith.constant 0 : index
      %c0_37 = arith.constant 0 : index
      %63 = vector.load %arg9[%c0_35, %c0_36, %c0_37] : memref<1x1x128xf32, #tpu.memory_space<vmem>>, vector<1x1x128xf32>
      %64 = vector.shape_cast %63 : vector<1x1x128xf32> to vector<1x128xf32>
      %65 = vector.broadcast %64 : vector<1x128xf32> to vector<64x128xf32>
      %66 = arith.addf %62, %65 : vector<64x128xf32>
      %cst_38 = arith.constant 0.000000e+00 : f32
      %67 = vector.broadcast %cst_38 : f32 to vector<64x128xf32>
      %68 = arith.maximumf %66, %67 : vector<64x128xf32>
      %69 = arith.index_cast %6 : i32 to index
      %c0_39 = arith.constant 0 : index
      %70 = vector.load %arg15[%69, %c0_39] : memref<128x128xf32, #tpu.memory_space<vmem>>, vector<64x128xf32>
      tpu.vector_store %arg15[%69, %c0_39], %68 {strides = array<i32>} : memref<128x128xf32, #tpu.memory_space<vmem>>, vector<64x128xf32>,
    } else {
    }
    %c1_i32_16 = arith.constant 1 : i32
    %33 = arith.cmpi eq, %arg0, %c1_i32_16 : i32
    %c1_i32_17 = arith.constant 1 : i32
    %34 = arith.cmpi eq, %arg1, %c1_i32_17 : i32
    %35 = arith.andi %33, %34 : i1
    %36 = arith.extui %35 : i1 to i32
    %c0_i32_18 = arith.constant 0 : i32
    %37 = arith.cmpi ne, %36, %c0_i32_18 : i32
    scf.if %37 {
      %c0 = arith.constant 0 : index
      %c0_19 = arith.constant 0 : index
      %38 = vector.load %arg5[%c0, %c0_19] : memref<8x128xf32, #tpu.memory_space<vmem>>, vector<8x128xf32>
      %c0_20 = arith.constant 0 : index
      %c0_21 = arith.constant 0 : index
      %39 = vector.load %arg15[%c0_20, %c0_21] : memref<128x128xf32, #tpu.memory_space<vmem>>, vector<128x128xf32>
      %cst = arith.constant dense<0.000000e+00> : vector<8x128xf32>
      %40 = tpu.matmul %38, %39, %cst {dimension_numbers = #tpu.dot_dimension_numbers<[1], [0], [0], [1], [0, 0, 1, 1], [], []>} : vector<8x128xf32>, vector<128x128xf32>, vector<8x128xf32> -> vector<8x128xf32>
      %c0_22 = arith.constant 0 : index
      %c0_23 = arith.constant 0 : index
      %41 = vector.load %arg10[%c0_22, %c0_23] : memref<128x128xf32, #tpu.memory_space<vmem>>, vector<128x128xf32>
      %cst_24 = arith.constant dense<0.000000e+00> : vector<8x128xf32>
      %42 = tpu.matmul %40, %41, %cst_24 {dimension_numbers = #tpu.dot_dimension_numbers<[1], [0], [0], [1], [0, 0, 1, 1], [], []>} : vector<8x128xf32>, vector<128x128xf32>, vector<8x128xf32> -> vector<8x128xf32>
      %c0_25 = arith.constant 0 : index
      %c0_26 = arith.constant 0 : index
      %43 = vector.load %arg11[%c0_25, %c0_26] : memref<1x128xf32, #tpu.memory_space<vmem>>, vector<1x128xf32>
      %44 = vector.broadcast %43 : vector<1x128xf32> to vector<8x128xf32>
      %45 = arith.addf %42, %44 : vector<8x128xf32>
      %cst_27 = arith.constant 0.000000e+00 : f32
      %46 = vector.broadcast %cst_27 : f32 to vector<8x128xf32>
      %47 = arith.maximumf %45, %46 : vector<8x128xf32>
      %c0_28 = arith.constant 0 : index
      %c0_29 = arith.constant 0 : index
      %48 = vector.load %arg12[%c0_28, %c0_29] : memref<128x128xf32, #tpu.memory_space<vmem>>, vector<128x128xf32>
      %cst_30 = arith.constant dense<0.000000e+00> : vector<8x128xf32>
      %49 = tpu.matmul %47, %48, %cst_30 {dimension_numbers = #tpu.dot_dimension_numbers<[1], [0], [0], [1], [0, 0, 1, 1], [], []>} : vector<8x128xf32>, vector<128x128xf32>, vector<8x128xf32> -> vector<8x128xf32>
      %c0_31 = arith.constant 0 : index
      %c0_32 = arith.constant 0 : index
      %50 = vector.load %arg13[%c0_31, %c0_32] : memref<1x128xf32, #tpu.memory_space<vmem>>, vector<1x128xf32>
      %51 = vector.broadcast %50 : vector<1x128xf32> to vector<8x128xf32>
      %52 = arith.addf %49, %51 : vector<8x128xf32>
      %c0_33 = arith.constant 0 : index
      %c0_34 = arith.constant 0 : index
      %53 = vector.load %arg14[%c0_33, %c0_34] : memref<8x128xf32, #tpu.memory_space<vmem>>, vector<8x128xf32>
      tpu.vector_store %arg14[%c0_33, %c0_34], %52 {strides = array<i32>} : memref<8x128xf32, #tpu.memory_space<vmem>>, vector<8x128xf32>,
    } else {
    }
    return
  }
  func.func @transform_0(%arg0: i32, %arg1: i32, %arg2: memref<2xf32, #tpu.memory_space<smem>>) -> (i32, i32) {
    %c0_i32 = arith.constant 0 : i32
    %c0_i32_0 = arith.constant 0 : i32
    %c0_i32_1 = arith.constant 0 : i32
    return %c0_i32, %c0_i32_0 : i32, i32
  }
  func.func @transform_1(%arg0: i32, %arg1: i32, %arg2: memref<2xf32, #tpu.memory_space<smem>>) -> (i32, i32) {
    %c0_i32 = arith.constant 0 : i32
    %c0_i32_0 = arith.constant 0 : i32
    %c0_i32_1 = arith.constant 0 : i32
    return %c0_i32, %c0_i32_0 : i32, i32
  }
  func.func @transform_2(%arg0: i32, %arg1: i32, %arg2: memref<2xf32, #tpu.memory_space<smem>>) -> (i32, i32) {
    %c0_i32 = arith.constant 0 : i32
    %c0_i32_0 = arith.constant 0 : i32
    %c0_i32_1 = arith.constant 0 : i32
    return %c0_i32, %c0_i32_0 : i32, i32
  }
  func.func @transform_3(%arg0: i32, %arg1: i32, %arg2: memref<2xf32, #tpu.memory_space<smem>>) -> (i32, i32, i32) {
    %c0_i32 = arith.constant 0 : i32
    %c0_i32_0 = arith.constant 0 : i32
    %c0_i32_1 = arith.constant 0 : i32
    return %arg0, %c0_i32, %c0_i32_0 : i32, i32, i32
  }
  func.func @transform_4(%arg0: i32, %arg1: i32, %arg2: memref<2xf32, #tpu.memory_space<smem>>) -> (i32, i32, i32) {
    %c0_i32 = arith.constant 0 : i32
    %c0_i32_0 = arith.constant 0 : i32
    %c0_i32_1 = arith.constant 0 : i32
    return %arg0, %c0_i32, %c0_i32_0 : i32, i32, i32
  }
  func.func @transform_5(%arg0: i32, %arg1: i32, %arg2: memref<2xf32, #tpu.memory_space<smem>>) -> (i32, i32, i32) {
    %c0_i32 = arith.constant 0 : i32
    %c0_i32_0 = arith.constant 0 : i32
    %c0_i32_1 = arith.constant 0 : i32
    return %arg0, %c0_i32, %c0_i32_0 : i32, i32, i32
  }
  func.func @transform_6(%arg0: i32, %arg1: i32, %arg2: memref<2xf32, #tpu.memory_space<smem>>) -> (i32, i32, i32) {
    %c0_i32 = arith.constant 0 : i32
    %c0_i32_0 = arith.constant 0 : i32
    %c0_i32_1 = arith.constant 0 : i32
    return %arg0, %c0_i32, %c0_i32_0 : i32, i32, i32
  }
  func.func @transform_7(%arg0: i32, %arg1: i32, %arg2: memref<2xf32, #tpu.memory_space<smem>>) -> (i32, i32) {
    %c0_i32 = arith.constant 0 : i32
    %c0_i32_0 = arith.constant 0 : i32
    %c0_i32_1 = arith.constant 0 : i32
    return %c0_i32, %c0_i32_0 : i32, i32
  }
  func.func @transform_8(%arg0: i32, %arg1: i32, %arg2: memref<2xf32, #tpu.memory_space<smem>>) -> (i32, i32) {
    %c0_i32 = arith.constant 0 : i32
    %c0_i32_0 = arith.constant 0 : i32
    %c0_i32_1 = arith.constant 0 : i32
    return %c0_i32, %c0_i32_0 : i32, i32
  }
  func.func @transform_9(%arg0: i32, %arg1: i32, %arg2: memref<2xf32, #tpu.memory_space<smem>>) -> (i32, i32) {
    %c0_i32 = arith.constant 0 : i32
    %c0_i32_0 = arith.constant 0 : i32
    %c0_i32_1 = arith.constant 0 : i32
    return %c0_i32, %c0_i32_0 : i32, i32
  }
  func.func @transform_10(%arg0: i32, %arg1: i32, %arg2: memref<2xf32, #tpu.memory_space<smem>>) -> (i32, i32) {
    %c0_i32 = arith.constant 0 : i32
    %c0_i32_0 = arith.constant 0 : i32
    %c0_i32_1 = arith.constant 0 : i32
    return %c0_i32, %c0_i32_0 : i32, i32
  }
  func.func @transform_11(%arg0: i32, %arg1: i32, %arg2: memref<2xf32, #tpu.memory_space<smem>>) -> (i32, i32) {
    %c0_i32 = arith.constant 0 : i32
    %c0_i32_0 = arith.constant 0 : i32
    %c0_i32_1 = arith.constant 0 : i32
    return %c0_i32, %c0_i32_0 : i32, i32
  }
}

</mosaic_0001>

<llo_original>
// kernel: gin_forward.1
$region0: #{gin_forward.1}
  #allocation0 [shape = 'u32[]', space=smem, size = 0x4, offset = 0x4, fixed_abs, tag = 'smem constant byte address 0x4 - core index']
  #allocation1 [shape = 'u32[72,128]{1,0:T(1,128)}', space=vmem, size = 0x9000, scoped, tag = 'internal scratch']
  #allocation2 [shape = 'f32[128,128]{1,0:T(8,128)}', space=vmem, size = 0x10000, scoped, tag = 'scratch operand']
  #allocation3 [shape = 'f32[128,128]{1,0:T(8,128)}', space=vmem, size = 0x10000, scoped, tag = 'scratch operand']
  #allocation4 [shape = 's32[1]{0}', space=sflag, size = 0x4, scoped, tag = 'scoped memory for gin_forward.1']
  #allocation5 [shape = 'u8[512]{0}', space=smem, size = 0x200, scoped, tag = 'prefetched SMEM operand 0']
  %s0 = inlined_call_operand.vmem [shape: f32[2], index: 0, kind: input, shape index: {}]
  %s1 = inlined_call_operand.vmem [shape: bf16[128,128], index: 1, kind: input, shape index: {}]
  %s2 = inlined_call_operand.vmem [shape: f32[128,128], index: 2, kind: input, shape index: {}]
  %s3 = inlined_call_operand.vmem [shape: f32[8,128], index: 3, kind: input, shape index: {}]
  %s4 = inlined_call_operand.vmem [shape: f32[2,128,128], index: 4, kind: input, shape index: {}]
  %s5 = inlined_call_operand.vmem [shape: f32[2,1,128], index: 5, kind: input, shape index: {}]
  %s6 = inlined_call_operand.vmem [shape: f32[2,128,128], index: 6, kind: input, shape index: {}]
  %s7 = inlined_call_operand.vmem [shape: f32[2,1,128], index: 7, kind: input, shape index: {}]
  %s8 = inlined_call_operand.vmem [shape: f32[128,128], index: 8, kind: input, shape index: {}]
  %s9 = inlined_call_operand.vmem [shape: f32[1,128], index: 9, kind: input, shape index: {}]
  %s10 = inlined_call_operand.vmem [shape: f32[128,128], index: 10, kind: input, shape index: {}]
  %s11 = inlined_call_operand.vmem [shape: f32[1,128], index: 11, kind: input, shape index: {}]
  %s12 = inlined_call_operand.vmem [shape: f32[8,128], index: 12, kind: output, shape index: {}]
  %s13 = sld [smem:[#allocation0]]
  $region93: #{gin_forward.1} parent=0
    _
  %s15 = ssub.s32 1, %s13
  %s16 = scalar_select 0, %s15, %s13
  %s18 = sshll.u32 %s0, 4
  %s19 = int_to_ptr.vmem [resolvable:$true] %s18
  %21 = dma.vmem_to_smem %s19, 16, [#allocation5], [#allocation4]
  %23 = dma.done [#allocation4], 16
  %24 = sfence
  loop: start=0, step=1, limit=6
  $region2: #{gin_forward.1} parent=0 // loop_pre_header
    _
  $region3: #{gin_forward.1} parent=0 // loop_header
    %s26 = sphi 0, %s30
    %p27 = scmp.ge.s32.totalorder %s26, 6
    %s33 = sphi 0, %s45
    %s34 = sphi 0, %s41
    %s35 = sphi 0, %s33
    %s36 = sphi 0, %s34
    %s37 = sphi 0, %s35
    %s38 = sphi 0, %s36
    %s46 = sphi 0, %s46
    %s48 = sphi 0, %s46
    %s49 = sphi 0, %s48
    %s63 = sphi 0, %s49
    %s67 = sphi 0, %s67
    %s69 = sphi 0, %s67
    %s70 = sphi 0, %s69
    %s84 = sphi 0, %s70
    %s88 = sphi 0, %s88
    %s90 = sphi 0, %s88
    %s91 = sphi 0, %s90
    %s105 = sphi 0, %s91
    %s111 = sphi 0, %s113
    %s114 = sphi 0, %s111
    %s115 = sphi 0, %s114
    %s131 = sphi 0, %s115
    %s137 = sphi 0, %s139
    %s140 = sphi 0, %s137
    %s141 = sphi 0, %s140
    %s157 = sphi 0, %s141
    %s163 = sphi 0, %s165
    %s166 = sphi 0, %s163
    %s167 = sphi 0, %s166
    %s183 = sphi 0, %s167
    %s189 = sphi 0, %s191
    %s192 = sphi 0, %s189
    %s193 = sphi 0, %s192
    %s209 = sphi 0, %s193
    %s213 = sphi 0, %s213
    %s215 = sphi 0, %s213
    %s216 = sphi 0, %s215
    %s230 = sphi 0, %s216
    %s234 = sphi 0, %s234
    %s236 = sphi 0, %s234
    %s237 = sphi 0, %s236
    %s251 = sphi 0, %s237
    %s255 = sphi 0, %s255
    %s257 = sphi 0, %s255
    %s258 = sphi 0, %s257
    %s272 = sphi 0, %s258
    %s276 = sphi 0, %s276
    %s278 = sphi 0, %s276
    %s279 = sphi 0, %s278
    %s293 = sphi 0, %s279
    %s297 = sphi 0, %s297
    %s299 = sphi 0, %s297
    %s300 = sphi 0, %s299
    %s314 = sphi 0, %s300
  $region4: #{gin_forward.1} parent=0 // loop_header_branch
    %29 = sbr.rel (%p27) target = $region8
  $region5: #{gin_forward.1} parent=0 // loop_body
    %s31 = ssub.s32 %s26, 1
    %s32 = ssub.s32 %s26, 2
    %s39 = sadd.s32 1, %s34
    %p40 = scmp.ge.s32.totalorder %s39, 2
    %s41 = scalar_select %p40, 0, %s39
    %s42 = sadd.s32 1, %s33
    %s43 = scalar_select %p40, %s42, %s33
    %p44 = scmp.ge.s32.totalorder %s43, 2
    %s45 = scalar_select %p44, 0, %s43
    %s47 = sadd.s32 %s46, 1
    %p50 = scmp.eq.s32.totalorder %s26, 3
    %p51 = scmp.ne.s32.totalorder %s46, %s48
    %p52 = scmp.eq.s32.totalorder %s26, 0
    %p53 = por %p51, %p52
    %p54 = scmp.ne.s32.totalorder %s46, %s48
    %p55 = scmp.eq.s32.totalorder %s31, 3
    %p56 = por %p54, %p55
    %p57 = scmp.ne.s32.totalorder %s48, %s49
    %p58 = scmp.eq.s32.totalorder %s31, 0
    %p59 = por %p57, %p58
    %p60 = scmp.ne.s32.totalorder %s48, %s49
    %p61 = scmp.eq.s32.totalorder %s32, 3
    %p62 = por %p60, %p61
    %p64 = scmp.ne.s32.totalorder %s49, %s63
    %p65 = scmp.eq.s32.totalorder %s32, 0
    %p66 = por %p64, %p65
    %s68 = sadd.s32 %s67, 1
    %p71 = scmp.eq.s32.totalorder %s26, 3
    %p72 = scmp.ne.s32.totalorder %s67, %s69
    %p73 = scmp.eq.s32.totalorder %s26, 0
    %p74 = por %p72, %p73
    %p75 = scmp.ne.s32.totalorder %s67, %s69
    %p76 = scmp.eq.s32.totalorder %s31, 3
    %p77 = por %p75, %p76
    %p78 = scmp.ne.s32.totalorder %s69, %s70
    %p79 = scmp.eq.s32.totalorder %s31, 0
    %p80 = por %p78, %p79
    %p81 = scmp.ne.s32.totalorder %s69, %s70
    %p82 = scmp.eq.s32.totalorder %s32, 3
    %p83 = por %p81, %p82
    %p85 = scmp.ne.s32.totalorder %s70, %s84
    %p86 = scmp.eq.s32.totalorder %s32, 0
    %p87 = por %p85, %p86
    %s89 = sadd.s32 %s88, 1
    %p92 = scmp.eq.s32.totalorder %s26, 3
    %p93 = scmp.ne.s32.totalorder %s88, %s90
    %p94 = scmp.eq.s32.totalorder %s26, 0
    %p95 = por %p93, %p94
    %p96 = scmp.ne.s32.totalorder %s88, %s90
    %p97 = scmp.eq.s32.totalorder %s31, 3
    %p98 = por %p96, %p97
    %p99 = scmp.ne.s32.totalorder %s90, %s91
    %p100 = scmp.eq.s32.totalorder %s31, 0
    %p101 = por %p99, %p100
    %p102 = scmp.ne.s32.totalorder %s90, %s91
    %p103 = scmp.eq.s32.totalorder %s32, 3
    %p104 = por %p102, %p103
    %p106 = scmp.ne.s32.totalorder %s91, %s105
    %p107 = scmp.eq.s32.totalorder %s32, 0
    %p108 = por %p106, %p107
    %s109 = ssub.s32 %s33, %s45
    %p110 = scmp.eq.s32.totalorder %s109, 0
    %s112 = sadd.s32 %s111, 1
    %s113 = scalar_select %p110, %s111, %s112
    %p116 = pneg %p110
    %p117 = scmp.eq.s32.totalorder %s26, 3
    %p118 = por %p116, %p117
    %p119 = scmp.ne.s32.totalorder %s111, %s114
    %p120 = scmp.eq.s32.totalorder %s26, 0
    %p121 = por %p119, %p120
    %p122 = scmp.ne.s32.totalorder %s111, %s114
    %p123 = scmp.eq.s32.totalorder %s31, 3
    %p124 = por %p122, %p123
    %p125 = scmp.ne.s32.totalorder %s114, %s115
    %p126 = scmp.eq.s32.totalorder %s31, 0
    %p127 = por %p125, %p126
    %p128 = scmp.ne.s32.totalorder %s114, %s115
    %p129 = scmp.eq.s32.totalorder %s32, 3
    %p130 = por %p128, %p129
    %p132 = scmp.ne.s32.totalorder %s115, %s131
    %p133 = scmp.eq.s32.totalorder %s32, 0
    %p134 = por %p132, %p133
    %s135 = ssub.s32 %s33, %s45
    %p136 = scmp.eq.s32.totalorder %s135, 0
    %s138 = sadd.s32 %s137, 1
    %s139 = scalar_select %p136, %s137, %s138
    %p142 = pneg %p136
    %p143 = scmp.eq.s32.totalorder %s26, 3
    %p144 = por %p142, %p143
    %p145 = scmp.ne.s32.totalorder %s137, %s140
    %p146 = scmp.eq.s32.totalorder %s26, 0
    %p147 = por %p145, %p146
    %p148 = scmp.ne.s32.totalorder %s137, %s140
    %p149 = scmp.eq.s32.totalorder %s31, 3
    %p150 = por %p148, %p149
    %p151 = scmp.ne.s32.totalorder %s140, %s141
    %p152 = scmp.eq.s32.totalorder %s31, 0
    %p153 = por %p151, %p152
    %p154 = scmp.ne.s32.totalorder %s140, %s141
    %p155 = scmp.eq.s32.totalorder %s32, 3
    %p156 = por %p154, %p155
    %p158 = scmp.ne.s32.totalorder %s141, %s157
    %p159 = scmp.eq.s32.totalorder %s32, 0
    %p160 = por %p158, %p159
    %s161 = ssub.s32 %s33, %s45
    %p162 = scmp.eq.s32.totalorder %s161, 0
    %s164 = sadd.s32 %s163, 1
    %s165 = scalar_select %p162, %s163, %s164
    %p168 = pneg %p162
    %p169 = scmp.eq.s32.totalorder %s26, 3
    %p170 = por %p168, %p169
    %p171 = scmp.ne.s32.totalorder %s163, %s166
    %p172 = scmp.eq.s32.totalorder %s26, 0
    %p173 = por %p171, %p172
    %p174 = scmp.ne.s32.totalorder %s163, %s166
    %p175 = scmp.eq.s32.totalorder %s31, 3
    %p176 = por %p174, %p175
    %p177 = scmp.ne.s32.totalorder %s166, %s167
    %p178 = scmp.eq.s32.totalorder %s31, 0
    %p179 = por %p177, %p178
    %p180 = scmp.ne.s32.totalorder %s166, %s167
    %p181 = scmp.eq.s32.totalorder %s32, 3
    %p182 = por %p180, %p181
    %p184 = scmp.ne.s32.totalorder %s167, %s183
    %p185 = scmp.eq.s32.totalorder %s32, 0
    %p186 = por %p184, %p185
    %s187 = ssub.s32 %s33, %s45
    %p188 = scmp.eq.s32.totalorder %s187, 0
    %s190 = sadd.s32 %s189, 1
    %s191 = scalar_select %p188, %s189, %s190
    %p194 = pneg %p188
    %p195 = scmp.eq.s32.totalorder %s26, 3
    %p196 = por %p194, %p195
    %p197 = scmp.ne.s32.totalorder %s189, %s192
    %p198 = scmp.eq.s32.totalorder %s26, 0
    %p199 = por %p197, %p198
    %p200 = scmp.ne.s32.totalorder %s189, %s192
    %p201 = scmp.eq.s32.totalorder %s31, 3
    %p202 = por %p200, %p201
    %p203 = scmp.ne.s32.totalorder %s192, %s193
    %p204 = scmp.eq.s32.totalorder %s31, 0
    %p205 = por %p203, %p204
    %p206 = scmp.ne.s32.totalorder %s192, %s193
    %p207 = scmp.eq.s32.totalorder %s32, 3
    %p208 = por %p206, %p207
    %p210 = scmp.ne.s32.totalorder %s193, %s209
    %p211 = scmp.eq.s32.totalorder %s32, 0
    %p212 = por %p210, %p211
    %s214 = sadd.s32 %s213, 1
    %p217 = scmp.eq.s32.totalorder %s26, 3
    %p218 = scmp.ne.s32.totalorder %s213, %s215
    %p219 = scmp.eq.s32.totalorder %s26, 0
    %p220 = por %p218, %p219
    %p221 = scmp.ne.s32.totalorder %s213, %s215
    %p222 = scmp.eq.s32.totalorder %s31, 3
    %p223 = por %p221, %p222
    %p224 = scmp.ne.s32.totalorder %s215, %s216
    %p225 = scmp.eq.s32.totalorder %s31, 0
    %p226 = por %p224, %p225
    %p227 = scmp.ne.s32.totalorder %s215, %s216
    %p228 = scmp.eq.s32.totalorder %s32, 3
    %p229 = por %p227, %p228
    %p231 = scmp.ne.s32.totalorder %s216, %s230
    %p232 = scmp.eq.s32.totalorder %s32, 0
    %p233 = por %p231, %p232
    %s235 = sadd.s32 %s234, 1
    %p238 = scmp.eq.s32.totalorder %s26, 3
    %p239 = scmp.ne.s32.totalorder %s234, %s236
    %p240 = scmp.eq.s32.totalorder %s26, 0
    %p241 = por %p239, %p240
    %p242 = scmp.ne.s32.totalorder %s234, %s236
    %p243 = scmp.eq.s32.totalorder %s31, 3
    %p244 = por %p242, %p243
    %p245 = scmp.ne.s32.totalorder %s236, %s237
    %p246 = scmp.eq.s32.totalorder %s31, 0
    %p247 = por %p245, %p246
    %p248 = scmp.ne.s32.totalorder %s236, %s237
    %p249 = scmp.eq.s32.totalorder %s32, 3
    %p250 = por %p248, %p249
    %p252 = scmp.ne.s32.totalorder %s237, %s251
    %p253 = scmp.eq.s32.totalorder %s32, 0
    %p254 = por %p252, %p253
    %s256 = sadd.s32 %s255, 1
    %p259 = scmp.eq.s32.totalorder %s26, 3
    %p260 = scmp.ne.s32.totalorder %s255, %s257
    %p261 = scmp.eq.s32.totalorder %s26, 0
    %p262 = por %p260, %p261
    %p263 = scmp.ne.s32.totalorder %s255, %s257
    %p264 = scmp.eq.s32.totalorder %s31, 3
    %p265 = por %p263, %p264
    %p266 = scmp.ne.s32.totalorder %s257, %s258
    %p267 = scmp.eq.s32.totalorder %s31, 0
    %p268 = por %p266, %p267
    %p269 = scmp.ne.s32.totalorder %s257, %s258
    %p270 = scmp.eq.s32.totalorder %s32, 3
    %p271 = por %p269, %p270
    %p273 = scmp.ne.s32.totalorder %s258, %s272
    %p274 = scmp.eq.s32.totalorder %s32, 0
    %p275 = por %p273, %p274
    %s277 = sadd.s32 %s276, 1
    %p280 = scmp.eq.s32.totalorder %s26, 3
    %p281 = scmp.ne.s32.totalorder %s276, %s278
    %p282 = scmp.eq.s32.totalorder %s26, 0
    %p283 = por %p281, %p282
    %p284 = scmp.ne.s32.totalorder %s276, %s278
    %p285 = scmp.eq.s32.totalorder %s31, 3
    %p286 = por %p284, %p285
    %p287 = scmp.ne.s32.totalorder %s278, %s279
    %p288 = scmp.eq.s32.totalorder %s31, 0
    %p289 = por %p287, %p288
    %p290 = scmp.ne.s32.totalorder %s278, %s279
    %p291 = scmp.eq.s32.totalorder %s32, 3
    %p292 = por %p290, %p291
    %p294 = scmp.ne.s32.totalorder %s279, %s293
    %p295 = scmp.eq.s32.totalorder %s32, 0
    %p296 = por %p294, %p295
    %s298 = sadd.s32 %s297, 1
    %p301 = scmp.eq.s32.totalorder %s26, 3
    %p302 = scmp.ne.s32.totalorder %s297, %s299
    %p303 = scmp.eq.s32.totalorder %s26, 0
    %p304 = por %p302, %p303
    %p305 = scmp.ne.s32.totalorder %s297, %s299
    %p306 = scmp.eq.s32.totalorder %s31, 3
    %p307 = por %p305, %p306
    %p308 = scmp.ne.s32.totalorder %s299, %s300
    %p309 = scmp.eq.s32.totalorder %s31, 0
    %p310 = por %p308, %p309
    %p311 = scmp.ne.s32.totalorder %s299, %s300
    %p312 = scmp.eq.s32.totalorder %s32, 3
    %p313 = por %p311, %p312
    %p315 = scmp.ne.s32.totalorder %s300, %s314
    %p316 = scmp.eq.s32.totalorder %s32, 0
    %p317 = por %p315, %p316
    %p318 = scmp.le.s32.totalorder 1, %s26
    %p319 = scmp.lt.s32.totalorder %s26, 5
    %p320 = pnand %p318, %p319
    %p321 = pneg %p320
    // Predicated region
    $region9: #{gin_forward.1} parent=5 // pred_check
      _
    $region10: #{gin_forward.1} parent=5 // pred_check_branch
      %323 = sbr.rel (%p320) target = $region12
    $region11: #{gin_forward.1} parent=5 // pred_region
      %s324 = ssub.s32 %s26, 1
      // Predicated region
      $region13: #{gin_forward.1} parent=11 // pred_check
        %p325 = pneg %p59
      $region14: #{gin_forward.1} parent=11 // pred_check_branch
        %327 = sbr.rel (%p325) target = $region16
      $region15: #{gin_forward.1} parent=11 // pred_region
        _
      $region16: #{gin_forward.1} parent=11 // pred_fallthru
        _
      // Predicated region
      $region17: #{gin_forward.1} parent=11 // pred_check
        %p328 = pneg %p80
      $region18: #{gin_forward.1} parent=11 // pred_check_branch
        %330 = sbr.rel (%p328) target = $region20
      $region19: #{gin_forward.1} parent=11 // pred_region
        _
      $region20: #{gin_forward.1} parent=11 // pred_fallthru
        _
      // Predicated region
      $region21: #{gin_forward.1} parent=11 // pred_check
        %p331 = pneg %p101
      $region22: #{gin_forward.1} parent=11 // pred_check_branch
        %333 = sbr.rel (%p331) target = $region24
      $region23: #{gin_forward.1} parent=11 // pred_region
        _
      $region24: #{gin_forward.1} parent=11 // pred_fallthru
        _
      // Predicated region
      $region25: #{gin_forward.1} parent=11 // pred_check
        %p334 = pneg %p226
      $region26: #{gin_forward.1} parent=11 // pred_check_branch
        %336 = sbr.rel (%p334) target = $region28
      $region27: #{gin_forward.1} parent=11 // pred_region
        _
      $region28: #{gin_forward.1} parent=11 // pred_fallthru
        _
      // Predicated region
      $region29: #{gin_forward.1} parent=11 // pred_check
        %p337 = pneg %p247
      $region30: #{gin_forward.1} parent=11 // pred_check_branch
        %339 = sbr.rel (%p337) target = $region32
      $region31: #{gin_forward.1} parent=11 // pred_region
        _
      $region32: #{gin_forward.1} parent=11 // pred_fallthru
        _
      // Predicated region
      $region33: #{gin_forward.1} parent=11 // pred_check
        %p340 = pneg %p268
      $region34: #{gin_forward.1} parent=11 // pred_check_branch
        %342 = sbr.rel (%p340) target = $region36
      $region35: #{gin_forward.1} parent=11 // pred_region
        _
      $region36: #{gin_forward.1} parent=11 // pred_fallthru
        _
      // Predicated region
      $region37: #{gin_forward.1} parent=11 // pred_check
        %p343 = pneg %p289
      $region38: #{gin_forward.1} parent=11 // pred_check_branch
        %345 = sbr.rel (%p343) target = $region40
      $region39: #{gin_forward.1} parent=11 // pred_region
        _
      $region40: #{gin_forward.1} parent=11 // pred_fallthru
        _
    $region12: #{gin_forward.1} parent=5 // pred_fallthru
      _
    %p346 = scmp.lt.s32.totalorder %s26, 4
    // Predicated region
    $region41: #{gin_forward.1} parent=5 // pred_check
      %p347 = pneg %p346
    $region42: #{gin_forward.1} parent=5 // pred_check_branch
      %349 = sbr.rel (%p347) target = $region44
    $region43: #{gin_forward.1} parent=5 // pred_region
      // Predicated region
      $region45: #{gin_forward.1} parent=43 // pred_check
        %p350 = pneg %p121
      $region46: #{gin_forward.1} parent=43 // pred_check_branch
        %352 = sbr.rel (%p350) target = $region48
      $region47: #{gin_forward.1} parent=43 // pred_region
        %p353 = scmp.lt.s32.totalorder %s33, 1
        %s354 = scalar_select %p353, %s33, 1
        %s355 = smul.addr %s354, 16
        %s356 = smul.addr %s355, 8
        %s357 = scalar_lea.vmem %s4, %s356
      $region48: #{gin_forward.1} parent=43 // pred_fallthru
        _
      // Predicated region
      $region49: #{gin_forward.1} parent=43 // pred_check
        %p358 = pneg %p147
      $region50: #{gin_forward.1} parent=43 // pred_check_branch
        %360 = sbr.rel (%p358) target = $region52
      $region51: #{gin_forward.1} parent=43 // pred_region
        %p361 = scmp.lt.s32.totalorder %s33, 1
        %s362 = scalar_select %p361, %s33, 1
        %s363 = scalar_lea.vmem %s5, %s362
      $region52: #{gin_forward.1} parent=43 // pred_fallthru
        _
      // Predicated region
      $region53: #{gin_forward.1} parent=43 // pred_check
        %p364 = pneg %p173
      $region54: #{gin_forward.1} parent=43 // pred_check_branch
        %366 = sbr.rel (%p364) target = $region56
      $region55: #{gin_forward.1} parent=43 // pred_region
        %p367 = scmp.lt.s32.totalorder %s33, 1
        %s368 = scalar_select %p367, %s33, 1
        %s369 = smul.addr %s368, 16
        %s370 = smul.addr %s369, 8
        %s371 = scalar_lea.vmem %s6, %s370
      $region56: #{gin_forward.1} parent=43 // pred_fallthru
        _
      // Predicated region
      $region57: #{gin_forward.1} parent=43 // pred_check
        %p372 = pneg %p199
      $region58: #{gin_forward.1} parent=43 // pred_check_branch
        %374 = sbr.rel (%p372) target = $region60
      $region59: #{gin_forward.1} parent=43 // pred_region
        %p375 = scmp.lt.s32.totalorder %s33, 1
        %s376 = scalar_select %p375, %s33, 1
        %s377 = scalar_lea.vmem %s7, %s376
      $region60: #{gin_forward.1} parent=43 // pred_fallthru
        _
    $region44: #{gin_forward.1} parent=5 // pred_fallthru
      _
    %p378 = scmp.le.s32.totalorder 1, %s26
    %p379 = scmp.lt.s32.totalorder %s26, 5
    %p380 = pnand %p378, %p379
    %p381 = pneg %p380
    // Predicated region
    $region61: #{gin_forward.1} parent=5 // pred_check
      _
    $region62: #{gin_forward.1} parent=5 // pred_check_branch
      %383 = sbr.rel (%p380) target = $region64
    $region63: #{gin_forward.1} parent=5 // pred_region
      %s384 = ssub.s32 %s26, 1
      %p385 = pneg %p59
      %p386 = pneg %p56
      %p387 = pneg %p80
      %p388 = pneg %p77
      %p389 = pneg %p101
      %p390 = pneg %p98
      %p391 = scmp.lt.s32.totalorder %s35, 1
      %s392 = scalar_select %p391, %s35, 1
      %s393 = smul.addr %s392, 16
      %s394 = smul.addr %s393, 8
      %s395 = scalar_lea.vmem %s4, %s394
      %p396 = pneg %p127
      %p397 = pneg %p124
      %p398 = scmp.lt.s32.totalorder %s35, 1
      %s399 = scalar_select %p398, %s35, 1
      %s400 = scalar_lea.vmem %s5, %s399
      %p401 = pneg %p153
      %p402 = pneg %p150
      %p403 = scmp.lt.s32.totalorder %s35, 1
      %s404 = scalar_select %p403, %s35, 1
      %s405 = smul.addr %s404, 16
      %s406 = smul.addr %s405, 8
      %s407 = scalar_lea.vmem %s6, %s406
      %p408 = pneg %p179
      %p409 = pneg %p176
      %p410 = scmp.lt.s32.totalorder %s35, 1
      %s411 = scalar_select %p410, %s35, 1
      %s412 = scalar_lea.vmem %s7, %s411
      %p413 = pneg %p205
      %p414 = pneg %p202
      %p415 = pneg %p226
      %p416 = pneg %p223
      %p417 = pneg %p247
      %p418 = pneg %p244
      %p419 = pneg %p268
      %p420 = pneg %p265
      %p421 = pneg %p289
      %p422 = pneg %p286
      %p423 = pneg %p310
      %p424 = pneg %p307
      %p425 = scmp.lt.s32.totalorder %s35, 1
      %s426 = scalar_select %p425, %s35, 1
      %s427 = smul.addr %s426, 16
      %s428 = smul.addr %s427, 8
      %s429 = scalar_lea.vmem %s4, %s428
      %p430 = scmp.lt.s32.totalorder %s35, 1
      %s431 = scalar_select %p430, %s35, 1
      %s432 = scalar_lea.vmem %s5, %s431
      %p433 = scmp.lt.s32.totalorder %s35, 1
      %s434 = scalar_select %p433, %s35, 1
      %s435 = smul.addr %s434, 16
      %s436 = smul.addr %s435, 8
      %s437 = scalar_lea.vmem %s6, %s436
      %p438 = scmp.lt.s32.totalorder %s35, 1
      %s439 = scalar_select %p438, %s35, 1
      %s440 = scalar_lea.vmem %s7, %s439
      %p441 = scmp.eq.s32.totalorder %s35, 0
      %p442 = scmp.eq.s32.totalorder %s36, 0
      %p443 = pnand %p441, %p442
      %p444 = pneg %p443
      // Predicated region
      $region65: #{gin_forward.1} parent=63 // pred_check
        _
      $region66: #{gin_forward.1} parent=63 // pred_check_branch
        %446 = sbr.rel (%p443) target = $region68
      $region67: #{gin_forward.1} parent=63 // pred_region
        %v447 = vld [vmem:[%s2] sm:$0xff]
        %v448 = vld [vmem:[%s2 + $0x8] sm:$0xff]
        %v449 = vld [vmem:[%s2 + $0x10] sm:$0xff]
        %v450 = vld [vmem:[%s2 + $0x18] sm:$0xff]
        %v451 = vld [vmem:[%s2 + $0x20] sm:$0xff]
        %v452 = vld [vmem:[%s2 + $0x28] sm:$0xff]
        %v453 = vld [vmem:[%s2 + $0x30] sm:$0xff]
        %v454 = vld [vmem:[%s2 + $0x38] sm:$0xff]
        %v455 = vld [vmem:[%s2 + $0x40] sm:$0xff]
        %v456 = vld [vmem:[%s2 + $0x48] sm:$0xff]
        %v457 = vld [vmem:[%s2 + $0x50] sm:$0xff]
        %v458 = vld [vmem:[%s2 + $0x58] sm:$0xff]
        %v459 = vld [vmem:[%s2 + $0x60] sm:$0xff]
        %v460 = vld [vmem:[%s2 + $0x68] sm:$0xff]
        %v461 = vld [vmem:[%s2 + $0x70] sm:$0xff]
        %v462 = vld [vmem:[%s2 + $0x78] sm:$0xff]
        %463 = vst [vmem:[#allocation2] sm:$0xff] %v447
        %464 = vst [vmem:[#allocation2 + $0x8] sm:$0xff] %v448
        %465 = vst [vmem:[#allocation2 + $0x10] sm:$0xff] %v449
        %466 = vst [vmem:[#allocation2 + $0x18] sm:$0xff] %v450
        %467 = vst [vmem:[#allocation2 + $0x20] sm:$0xff] %v451
        %468 = vst [vmem:[#allocation2 + $0x28] sm:$0xff] %v452
        %469 = vst [vmem:[#allocation2 + $0x30] sm:$0xff] %v453
        %470 = vst [vmem:[#allocation2 + $0x38] sm:$0xff] %v454
        %471 = vst [vmem:[#allocation2 + $0x40] sm:$0xff] %v455
        %472 = vst [vmem:[#allocation2 + $0x48] sm:$0xff] %v456
        %473 = vst [vmem:[#allocation2 + $0x50] sm:$0xff] %v457
        %474 = vst [vmem:[#allocation2 + $0x58] sm:$0xff] %v458
        %475 = vst [vmem:[#allocation2 + $0x60] sm:$0xff] %v459
        %476 = vst [vmem:[#allocation2 + $0x68] sm:$0xff] %v460
        %477 = vst [vmem:[#allocation2 + $0x70] sm:$0xff] %v461
        %478 = vst [vmem:[#allocation2 + $0x78] sm:$0xff] %v462
      $region68: #{gin_forward.1} parent=63 // pred_fallthru
        _
      %s479 = smul.u32 %s36, 64
      %p480 = scmp.lt.s32.totalorder %s35, 0
      %s481 = ssub.s32 0, %s35
      %s482 = scalar_select %p480, %s481, %s35
      %s483 = sand.u32 %s482, 1
      %s484 = ssub.s32 0, %s483
      %s485 = scalar_select %p480, %s484, %s483
      %p486 = scmp.ne.s32.totalorder %s485, 0
      %p487 = scmp.lt.s32.totalorder %s485, 0
      %p488 = pnand %p487, %p486
      %p489 = pneg %p488
      %s490 = sadd.s32 %s485, 2
      %s491 = scalar_select %p489, %s490, %s485
      %p492 = scmp.eq.s32.totalorder %s491, 0
      // Predicated region
      $region69: #{gin_forward.1} parent=63 // pred_check
        %p493 = pneg %p492
      $region70: #{gin_forward.1} parent=63 // pred_check_branch
        %495 = sbr.rel (%p493) target = $region72
      $region71: #{gin_forward.1} parent=63 // pred_region
        %v496 = vld [vmem:[#allocation2] sm:$0xff]
        %v497 = vld [vmem:[#allocation2 + $0x8] sm:$0xff]
        %v498 = vld [vmem:[#allocation2 + $0x10] sm:$0xff]
        %v499 = vld [vmem:[#allocation2 + $0x18] sm:$0xff]
        %v500 = vld [vmem:[#allocation2 + $0x20] sm:$0xff]
        %v501 = vld [vmem:[#allocation2 + $0x28] sm:$0xff]
        %v502 = vld [vmem:[#allocation2 + $0x30] sm:$0xff]
        %v503 = vld [vmem:[#allocation2 + $0x38] sm:$0xff]
        %v504 = vld [vmem:[#allocation2 + $0x40] sm:$0xff]
        %v505 = vld [vmem:[#allocation2 + $0x48] sm:$0xff]
        %v506 = vld [vmem:[#allocation2 + $0x50] sm:$0xff]
        %v507 = vld [vmem:[#allocation2 + $0x58] sm:$0xff]
        %v508 = vld [vmem:[#allocation2 + $0x60] sm:$0xff]
        %v509 = vld [vmem:[#allocation2 + $0x68] sm:$0xff]
        %v510 = vld [vmem:[#allocation2 + $0x70] sm:$0xff]
        %v511 = vld [vmem:[#allocation2 + $0x78] sm:$0xff]
        %s512 = sshra.s32 %s479, 3
        %s513 = sand.u32 %s479, 7
        %s514 = smul.addr %s512, 4
        %s515 = scalar_lea.vmem %s1, %s514
        %v516 = vld [vmem:[%s515] sm:$0xf]
        %v517 = vld [vmem:[%s515 + $0x4] sm:$0xf]
        %v518 = vld [vmem:[%s515 + $0x8] sm:$0xf]
        %v519 = vld [vmem:[%s515 + $0xc] sm:$0xf]
        %v520 = vld [vmem:[%s515 + $0x10] sm:$0xf]
        %v521 = vld [vmem:[%s515 + $0x14] sm:$0xf]
        %v522 = vld [vmem:[%s515 + $0x18] sm:$0xf]
        %v523 = vld [vmem:[%s515 + $0x1c] sm:$0xf]
        %v524 = vpack.c.bf16 %v497, %v496
        %v525 = vpack.c.bf16 %v499, %v498
        %v526 = vpack.c.bf16 %v501, %v500
        %v527 = vpack.c.bf16 %v503, %v502
        %v528 = vpack.c.bf16 %v505, %v504
        %v529 = vpack.c.bf16 %v507, %v506
        %v530 = vpack.c.bf16 %v509, %v508
        %v531 = vpack.c.bf16 %v511, %v510
        %v540 = vunpack.c.l.b16 %v516
        %v541 = vunpack.c.l.b16 %v517
        %v542 = vunpack.c.l.b16 %v518
        %v543 = vunpack.c.l.b16 %v519
        %v544 = vunpack.c.l.b16 %v520
        %v545 = vunpack.c.l.b16 %v521
        %v546 = vunpack.c.l.b16 %v522
        %v547 = vunpack.c.l.b16 %v523
        %v548 = vpack.c.b16 %v541, %v540
        %v549 = vpack.c.b16 %v543, %v542
        %v550 = vpack.c.b16 %v545, %v544
        %v551 = vpack.c.b16 %v547, %v546
        %556 = vmatpush.bf16.msra.mxu0 %v531
        %557 = vmatpush.bf16.msra.mxu0 %v530
        %558 = vmatpush.bf16.msra.mxu0 %v529
        %559 = vmatpush.bf16.msra.mxu0 %v528
        %560 = vmatpush.bf16.msra.mxu0 %v527
        %561 = vmatpush.bf16.msra.mxu0 %v526
        %562 = vmatpush.bf16.msra.mxu0 %v525
        %563 = vmatpush.bf16.msra.mxu0 %v524
        %564 = vmatmul.bf16.gmra.mxu0 %v548
        %v565 = vpop.f32.mrf.mxu0
        %v566 = vadd.f32 0.0, %v565
        %v567 = vpop.f32.mrf.mxu0
        %v568 = vadd.f32 0.0, %v567
        %569 = vmatmul.bf16.gmra.mxu0 %v549
        %v570 = vpop.f32.mrf.mxu0
        %v571 = vadd.f32 0.0, %v570
        %v572 = vpop.f32.mrf.mxu0
        %v573 = vadd.f32 0.0, %v572
        %574 = vmatmul.bf16.gmra.mxu0 %v550
        %v575 = vpop.f32.mrf.mxu0
        %v576 = vadd.f32 0.0, %v575
        %v577 = vpop.f32.mrf.mxu0
        %v578 = vadd.f32 0.0, %v577
        %579 = vmatmul.bf16.gmra.mxu0 %v551
        %v580 = vpop.f32.mrf.mxu0
        %v581 = vadd.f32 0.0, %v580
        %v582 = vpop.f32.mrf.mxu0
        %v583 = vadd.f32 0.0, %v582
        %584 = vdwg.mxu0
        %s585 = sld [smem:[#allocation5 + %s35]]
        %s586 = sadd.f32 %s585, 1.0
        %s587 = scalar_lea.vmem [#allocation2], %s479
        %v588 = vld [vmem:[%s587] sm:$0xff]
        %v589 = vld [vmem:[%s587 + $0x8] sm:$0xff]
        %v590 = vld [vmem:[%s587 + $0x10] sm:$0xff]
        %v591 = vld [vmem:[%s587 + $0x18] sm:$0xff]
        %v592 = vld [vmem:[%s587 + $0x20] sm:$0xff]
        %v593 = vld [vmem:[%s587 + $0x28] sm:$0xff]
        %v594 = vld [vmem:[%s587 + $0x30] sm:$0xff]
        %v595 = vld [vmem:[%s587 + $0x38] sm:$0xff]
        %v596 = vstv %s586
        %v597 = vmul.f32 %v596, %v588
        %v598 = vmul.f32 %v596, %v589
        %v599 = vmul.f32 %v596, %v590
        %v600 = vmul.f32 %v596, %v591
        %v601 = vmul.f32 %v596, %v592
        %v602 = vmul.f32 %v596, %v593
        %v603 = vmul.f32 %v596, %v594
        %v604 = vmul.f32 %v596, %v595
        %v605 = vadd.f32 %v597, %v566
        %v606 = vadd.f32 %v598, %v568
        %v607 = vadd.f32 %v599, %v571
        %v608 = vadd.f32 %v600, %v573
        %v609 = vadd.f32 %v601, %v576
        %v610 = vadd.f32 %v602, %v578
        %v611 = vadd.f32 %v603, %v581
        %v612 = vadd.f32 %v604, %v583
        %v613 = vld [vmem:[%s429] sm:$0xff]
        %v614 = vld [vmem:[%s429 + $0x8] sm:$0xff]
        %v615 = vld [vmem:[%s429 + $0x10] sm:$0xff]
        %v616 = vld [vmem:[%s429 + $0x18] sm:$0xff]
        %v617 = vld [vmem:[%s429 + $0x20] sm:$0xff]
        %v618 = vld [vmem:[%s429 + $0x28] sm:$0xff]
        %v619 = vld [vmem:[%s429 + $0x30] sm:$0xff]
        %v620 = vld [vmem:[%s429 + $0x38] sm:$0xff]
        %v621 = vld [vmem:[%s429 + $0x40] sm:$0xff]
        %v622 = vld [vmem:[%s429 + $0x48] sm:$0xff]
        %v623 = vld [vmem:[%s429 + $0x50] sm:$0xff]
        %v624 = vld [vmem:[%s429 + $0x58] sm:$0xff]
        %v625 = vld [vmem:[%s429 + $0x60] sm:$0xff]
        %v626 = vld [vmem:[%s429 + $0x68] sm:$0xff]
        %v627 = vld [vmem:[%s429 + $0x70] sm:$0xff]
        %v628 = vld [vmem:[%s429 + $0x78] sm:$0xff]
        %v629 = vld [vmem:[%s432] sm:$0x1]
        %v631 = vperm.slane %v629, 0
        %633 = vmatpush.msra.mxu0 %v628
        %634 = vmatpush.msra.mxu0 %v627
        %635 = vmatpush.msra.mxu0 %v626
        %636 = vmatpush.msra.mxu0 %v625
        %637 = vmatpush.msra.mxu0 %v624
        %638 = vmatpush.msra.mxu0 %v623
        %639 = vmatpush.msra.mxu0 %v622
        %640 = vmatpush.msra.mxu0 %v621
        %641 = vmatpush.msra.mxu0 %v620
        %642 = vmatpush.msra.mxu0 %v619
        %643 = vmatpush.msra.mxu0 %v618
        %644 = vmatpush.msra.mxu0 %v617
        %645 = vmatpush.msra.mxu0 %v616
        %646 = vmatpush.msra.mxu0 %v615
        %647 = vmatpush.msra.mxu0 %v614
        %648 = vmatpush.msra.mxu0 %v613
        %649 = vmatmul.f32.gmra.mxu0 %v605
        %v650 = vpop.f32.mrf.mxu0
        %v651 = vadd.f32 %v631, %v650
        %652 = vmatmul.f32.gmra.mxu0 %v606
        %v653 = vpop.f32.mrf.mxu0
        %v654 = vadd.f32 %v631, %v653
        %655 = vmatmul.f32.gmra.mxu0 %v607
        %v656 = vpop.f32.mrf.mxu0
        %v657 = vadd.f32 %v631, %v656
        %658 = vmatmul.f32.gmra.mxu0 %v608
        %v659 = vpop.f32.mrf.mxu0
        %v660 = vadd.f32 %v631, %v659
        %661 = vmatmul.f32.gmra.mxu0 %v609
        %v662 = vpop.f32.mrf.mxu0
        %v663 = vadd.f32 %v631, %v662
        %664 = vmatmul.f32.gmra.mxu0 %v610
        %v665 = vpop.f32.mrf.mxu0
        %v666 = vadd.f32 %v631, %v665
        %667 = vmatmul.f32.gmra.mxu0 %v611
        %v668 = vpop.f32.mrf.mxu0
        %v669 = vadd.f32 %v631, %v668
        %670 = vmatmul.f32.gmra.mxu0 %v612
        %v671 = vpop.f32.mrf.mxu0
        %v672 = vadd.f32 %v631, %v671
        %673 = vdwg.mxu0
        %v674 = vmax.f32 %v651, 0.0
        %v675 = vmax.f32 %v654, 0.0
        %v676 = vmax.f32 %v657, 0.0
        %v677 = vmax.f32 %v660, 0.0
        %v678 = vmax.f32 %v663, 0.0
        %v679 = vmax.f32 %v666, 0.0
        %v680 = vmax.f32 %v669, 0.0
        %v681 = vmax.f32 %v672, 0.0
        %v682 = vld [vmem:[%s437] sm:$0xff]
        %v683 = vld [vmem:[%s437 + $0x8] sm:$0xff]
        %v684 = vld [vmem:[%s437 + $0x10] sm:$0xff]
        %v685 = vld [vmem:[%s437 + $0x18] sm:$0xff]
        %v686 = vld [vmem:[%s437 + $0x20] sm:$0xff]
        %v687 = vld [vmem:[%s437 + $0x28] sm:$0xff]
        %v688 = vld [vmem:[%s437 + $0x30] sm:$0xff]
        %v689 = vld [vmem:[%s437 + $0x38] sm:$0xff]
        %v690 = vld [vmem:[%s437 + $0x40] sm:$0xff]
        %v691 = vld [vmem:[%s437 + $0x48] sm:$0xff]
        %v692 = vld [vmem:[%s437 + $0x50] sm:$0xff]
        %v693 = vld [vmem:[%s437 + $0x58] sm:$0xff]
        %v694 = vld [vmem:[%s437 + $0x60] sm:$0xff]
        %v695 = vld [vmem:[%s437 + $0x68] sm:$0xff]
        %v696 = vld [vmem:[%s437 + $0x70] sm:$0xff]
        %v697 = vld [vmem:[%s437 + $0x78] sm:$0xff]
        %v698 = vld [vmem:[%s440] sm:$0x1]
        %v700 = vperm.slane %v698, 0
        %702 = vmatpush.msra.mxu0 %v697
        %703 = vmatpush.msra.mxu0 %v696
        %704 = vmatpush.msra.mxu0 %v695
        %705 = vmatpush.msra.mxu0 %v694
        %706 = vmatpush.msra.mxu0 %v693
        %707 = vmatpush.msra.mxu0 %v692
        %708 = vmatpush.msra.mxu0 %v691
        %709 = vmatpush.msra.mxu0 %v690
        %710 = vmatpush.msra.mxu0 %v689
        %711 = vmatpush.msra.mxu0 %v688
        %712 = vmatpush.msra.mxu0 %v687
        %713 = vmatpush.msra.mxu0 %v686
        %714 = vmatpush.msra.mxu0 %v685
        %715 = vmatpush.msra.mxu0 %v684
        %716 = vmatpush.msra.mxu0 %v683
        %717 = vmatpush.msra.mxu0 %v682
        %718 = vmatmul.f32.gmra.mxu0 %v674
        %v719 = vpop.f32.mrf.mxu0
        %v720 = vadd.f32 %v700, %v719
        %721 = vmatmul.f32.gmra.mxu0 %v675
        %v722 = vpop.f32.mrf.mxu0
        %v723 = vadd.f32 %v700, %v722
        %724 = vmatmul.f32.gmra.mxu0 %v676
        %v725 = vpop.f32.mrf.mxu0
        %v726 = vadd.f32 %v700, %v725
        %727 = vmatmul.f32.gmra.mxu0 %v677
        %v728 = vpop.f32.mrf.mxu0
        %v729 = vadd.f32 %v700, %v728
        %730 = vmatmul.f32.gmra.mxu0 %v678
        %v731 = vpop.f32.mrf.mxu0
        %v732 = vadd.f32 %v700, %v731
        %733 = vmatmul.f32.gmra.mxu0 %v679
        %v734 = vpop.f32.mrf.mxu0
        %v735 = vadd.f32 %v700, %v734
        %736 = vmatmul.f32.gmra.mxu0 %v680
        %v737 = vpop.f32.mrf.mxu0
        %v738 = vadd.f32 %v700, %v737
        %739 = vmatmul.f32.gmra.mxu0 %v681
        %v740 = vpop.f32.mrf.mxu0
        %v741 = vadd.f32 %v700, %v740
        %742 = vdwg.mxu0
        %v743 = vmax.f32 %v720, 0.0
        %v744 = vmax.f32 %v723, 0.0
        %v745 = vmax.f32 %v726, 0.0
        %v746 = vmax.f32 %v729, 0.0
        %v747 = vmax.f32 %v732, 0.0
        %v748 = vmax.f32 %v735, 0.0
        %v749 = vmax.f32 %v738, 0.0
        %v750 = vmax.f32 %v741, 0.0
        %s751 = scalar_lea.vmem [#allocation3], %s479
        %752 = vst [vmem:[%s751] sm:$0xff] %v743
        %753 = vst [vmem:[%s751 + $0x8] sm:$0xff] %v744
        %754 = vst [vmem:[%s751 + $0x10] sm:$0xff] %v745
        %755 = vst [vmem:[%s751 + $0x18] sm:$0xff] %v746
        %756 = vst [vmem:[%s751 + $0x20] sm:$0xff] %v747
        %757 = vst [vmem:[%s751 + $0x28] sm:$0xff] %v748
        %758 = vst [vmem:[%s751 + $0x30] sm:$0xff] %v749
        %759 = vst [vmem:[%s751 + $0x38] sm:$0xff] %v750
      $region72: #{gin_forward.1} parent=63 // pred_fallthru
        _
      %p760 = scmp.eq.s32.totalorder %s491, 1
      // Predicated region
      $region73: #{gin_forward.1} parent=63 // pred_check
        %p761 = pneg %p760
      $region74: #{gin_forward.1} parent=63 // pred_check_branch
        %763 = sbr.rel (%p761) target = $region76
      $region75: #{gin_forward.1} parent=63 // pred_region
        %v764 = vld [vmem:[#allocation3] sm:$0xff]
        %v765 = vld [vmem:[#allocation3 + $0x8] sm:$0xff]
        %v766 = vld [vmem:[#allocation3 + $0x10] sm:$0xff]
        %v767 = vld [vmem:[#allocation3 + $0x18] sm:$0xff]
        %v768 = vld [vmem:[#allocation3 + $0x20] sm:$0xff]
        %v769 = vld [vmem:[#allocation3 + $0x28] sm:$0xff]
        %v770 = vld [vmem:[#allocation3 + $0x30] sm:$0xff]
        %v771 = vld [vmem:[#allocation3 + $0x38] sm:$0xff]
        %v772 = vld [vmem:[#allocation3 + $0x40] sm:$0xff]
        %v773 = vld [vmem:[#allocation3 + $0x48] sm:$0xff]
        %v774 = vld [vmem:[#allocation3 + $0x50] sm:$0xff]
        %v775 = vld [vmem:[#allocation3 + $0x58] sm:$0xff]
        %v776 = vld [vmem:[#allocation3 + $0x60] sm:$0xff]
        %v777 = vld [vmem:[#allocation3 + $0x68] sm:$0xff]
        %v778 = vld [vmem:[#allocation3 + $0x70] sm:$0xff]
        %v779 = vld [vmem:[#allocation3 + $0x78] sm:$0xff]
        %s780 = sshra.s32 %s479, 3
        %s781 = sand.u32 %s479, 7
        %s782 = smul.addr %s780, 4
        %s783 = scalar_lea.vmem %s1, %s782
        %v784 = vld [vmem:[%s783] sm:$0xf]
        %v785 = vld [vmem:[%s783 + $0x4] sm:$0xf]
        %v786 = vld [vmem:[%s783 + $0x8] sm:$0xf]
        %v787 = vld [vmem:[%s783 + $0xc] sm:$0xf]
        %v788 = vld [vmem:[%s783 + $0x10] sm:$0xf]
        %v789 = vld [vmem:[%s783 + $0x14] sm:$0xf]
        %v790 = vld [vmem:[%s783 + $0x18] sm:$0xf]
        %v791 = vld [vmem:[%s783 + $0x1c] sm:$0xf]
        %v792 = vpack.c.bf16 %v765, %v764
        %v793 = vpack.c.bf16 %v767, %v766
        %v794 = vpack.c.bf16 %v769, %v768
        %v795 = vpack.c.bf16 %v771, %v770
        %v796 = vpack.c.bf16 %v773, %v772
        %v797 = vpack.c.bf16 %v775, %v774
        %v798 = vpack.c.bf16 %v777, %v776
        %v799 = vpack.c.bf16 %v779, %v778
        %v808 = vunpack.c.l.b16 %v784
        %v809 = vunpack.c.l.b16 %v785
        %v810 = vunpack.c.l.b16 %v786
        %v811 = vunpack.c.l.b16 %v787
        %v812 = vunpack.c.l.b16 %v788
        %v813 = vunpack.c.l.b16 %v789
        %v814 = vunpack.c.l.b16 %v790
        %v815 = vunpack.c.l.b16 %v791
        %v816 = vpack.c.b16 %v809, %v808
        %v817 = vpack.c.b16 %v811, %v810
        %v818 = vpack.c.b16 %v813, %v812
        %v819 = vpack.c.b16 %v815, %v814
        %824 = vmatpush.bf16.msra.mxu0 %v799
        %825 = vmatpush.bf16.msra.mxu0 %v798
        %826 = vmatpush.bf16.msra.mxu0 %v797
        %827 = vmatpush.bf16.msra.mxu0 %v796
        %828 = vmatpush.bf16.msra.mxu0 %v795
        %829 = vmatpush.bf16.msra.mxu0 %v794
        %830 = vmatpush.bf16.msra.mxu0 %v793
        %831 = vmatpush.bf16.msra.mxu0 %v792
        %832 = vmatmul.bf16.gmra.mxu0 %v816
        %v833 = vpop.f32.mrf.mxu0
        %v834 = vadd.f32 0.0, %v833
        %v835 = vpop.f32.mrf.mxu0
        %v836 = vadd.f32 0.0, %v835
        %837 = vmatmul.bf16.gmra.mxu0 %v817
        %v838 = vpop.f32.mrf.mxu0
        %v839 = vadd.f32 0.0, %v838
        %v840 = vpop.f32.mrf.mxu0
        %v841 = vadd.f32 0.0, %v840
        %842 = vmatmul.bf16.gmra.mxu0 %v818
        %v843 = vpop.f32.mrf.mxu0
        %v844 = vadd.f32 0.0, %v843
        %v845 = vpop.f32.mrf.mxu0
        %v846 = vadd.f32 0.0, %v845
        %847 = vmatmul.bf16.gmra.mxu0 %v819
        %v848 = vpop.f32.mrf.mxu0
        %v849 = vadd.f32 0.0, %v848
        %v850 = vpop.f32.mrf.mxu0
        %v851 = vadd.f32 0.0, %v850
        %852 = vdwg.mxu0
        %s853 = sld [smem:[#allocation5 + %s35]]
        %s854 = sadd.f32 %s853, 1.0
        %s855 = scalar_lea.vmem [#allocation3], %s479
        %v856 = vld [vmem:[%s855] sm:$0xff]
        %v857 = vld [vmem:[%s855 + $0x8] sm:$0xff]
        %v858 = vld [vmem:[%s855 + $0x10] sm:$0xff]
        %v859 = vld [vmem:[%s855 + $0x18] sm:$0xff]
        %v860 = vld [vmem:[%s855 + $0x20] sm:$0xff]
        %v861 = vld [vmem:[%s855 + $0x28] sm:$0xff]
        %v862 = vld [vmem:[%s855 + $0x30] sm:$0xff]
        %v863 = vld [vmem:[%s855 + $0x38] sm:$0xff]
        %v864 = vstv %s854
        %v865 = vmul.f32 %v864, %v856
        %v866 = vmul.f32 %v864, %v857
        %v867 = vmul.f32 %v864, %v858
        %v868 = vmul.f32 %v864, %v859
        %v869 = vmul.f32 %v864, %v860
        %v870 = vmul.f32 %v864, %v861
        %v871 = vmul.f32 %v864, %v862
        %v872 = vmul.f32 %v864, %v863
        %v873 = vadd.f32 %v865, %v834
        %v874 = vadd.f32 %v866, %v836
        %v875 = vadd.f32 %v867, %v839
        %v876 = vadd.f32 %v868, %v841
        %v877 = vadd.f32 %v869, %v844
        %v878 = vadd.f32 %v870, %v846
        %v879 = vadd.f32 %v871, %v849
        %v880 = vadd.f32 %v872, %v851
        %v881 = vld [vmem:[%s429] sm:$0xff]
        %v882 = vld [vmem:[%s429 + $0x8] sm:$0xff]
        %v883 = vld [vmem:[%s429 + $0x10] sm:$0xff]
        %v884 = vld [vmem:[%s429 + $0x18] sm:$0xff]
        %v885 = vld [vmem:[%s429 + $0x20] sm:$0xff]
        %v886 = vld [vmem:[%s429 + $0x28] sm:$0xff]
        %v887 = vld [vmem:[%s429 + $0x30] sm:$0xff]
        %v888 = vld [vmem:[%s429 + $0x38] sm:$0xff]
        %v889 = vld [vmem:[%s429 + $0x40] sm:$0xff]
        %v890 = vld [vmem:[%s429 + $0x48] sm:$0xff]
        %v891 = vld [vmem:[%s429 + $0x50] sm:$0xff]
        %v892 = vld [vmem:[%s429 + $0x58] sm:$0xff]
        %v893 = vld [vmem:[%s429 + $0x60] sm:$0xff]
        %v894 = vld [vmem:[%s429 + $0x68] sm:$0xff]
        %v895 = vld [vmem:[%s429 + $0x70] sm:$0xff]
        %v896 = vld [vmem:[%s429 + $0x78] sm:$0xff]
        %v897 = vld [vmem:[%s432] sm:$0x1]
        %v899 = vperm.slane %v897, 0
        %901 = vmatpush.msra.mxu0 %v896
        %902 = vmatpush.msra.mxu0 %v895
        %903 = vmatpush.msra.mxu0 %v894
        %904 = vmatpush.msra.mxu0 %v893
        %905 = vmatpush.msra.mxu0 %v892
        %906 = vmatpush.msra.mxu0 %v891
        %907 = vmatpush.msra.mxu0 %v890
        %908 = vmatpush.msra.mxu0 %v889
        %909 = vmatpush.msra.mxu0 %v888
        %910 = vmatpush.msra.mxu0 %v887
        %911 = vmatpush.msra.mxu0 %v886
        %912 = vmatpush.msra.mxu0 %v885
        %913 = vmatpush.msra.mxu0 %v884
        %914 = vmatpush.msra.mxu0 %v883
        %915 = vmatpush.msra.mxu0 %v882
        %916 = vmatpush.msra.mxu0 %v881
        %917 = vmatmul.f32.gmra.mxu0 %v873
        %v918 = vpop.f32.mrf.mxu0
        %v919 = vadd.f32 %v899, %v918
        %920 = vmatmul.f32.gmra.mxu0 %v874
        %v921 = vpop.f32.mrf.mxu0
        %v922 = vadd.f32 %v899, %v921
        %923 = vmatmul.f32.gmra.mxu0 %v875
        %v924 = vpop.f32.mrf.mxu0
        %v925 = vadd.f32 %v899, %v924
        %926 = vmatmul.f32.gmra.mxu0 %v876
        %v927 = vpop.f32.mrf.mxu0
        %v928 = vadd.f32 %v899, %v927
        %929 = vmatmul.f32.gmra.mxu0 %v877
        %v930 = vpop.f32.mrf.mxu0
        %v931 = vadd.f32 %v899, %v930
        %932 = vmatmul.f32.gmra.mxu0 %v878
        %v933 = vpop.f32.mrf.mxu0
        %v934 = vadd.f32 %v899, %v933
        %935 = vmatmul.f32.gmra.mxu0 %v879
        %v936 = vpop.f32.mrf.mxu0
        %v937 = vadd.f32 %v899, %v936
        %938 = vmatmul.f32.gmra.mxu0 %v880
        %v939 = vpop.f32.mrf.mxu0
        %v940 = vadd.f32 %v899, %v939
        %941 = vdwg.mxu0
        %v942 = vmax.f32 %v919, 0.0
        %v943 = vmax.f32 %v922, 0.0
        %v944 = vmax.f32 %v925, 0.0
        %v945 = vmax.f32 %v928, 0.0
        %v946 = vmax.f32 %v931, 0.0
        %v947 = vmax.f32 %v934, 0.0
        %v948 = vmax.f32 %v937, 0.0
        %v949 = vmax.f32 %v940, 0.0
        %v950 = vld [vmem:[%s437] sm:$0xff]
        %v951 = vld [vmem:[%s437 + $0x8] sm:$0xff]
        %v952 = vld [vmem:[%s437 + $0x10] sm:$0xff]
        %v953 = vld [vmem:[%s437 + $0x18] sm:$0xff]
        %v954 = vld [vmem:[%s437 + $0x20] sm:$0xff]
        %v955 = vld [vmem:[%s437 + $0x28] sm:$0xff]
        %v956 = vld [vmem:[%s437 + $0x30] sm:$0xff]
        %v957 = vld [vmem:[%s437 + $0x38] sm:$0xff]
        %v958 = vld [vmem:[%s437 + $0x40] sm:$0xff]
        %v959 = vld [vmem:[%s437 + $0x48] sm:$0xff]
        %v960 = vld [vmem:[%s437 + $0x50] sm:$0xff]
        %v961 = vld [vmem:[%s437 + $0x58] sm:$0xff]
        %v962 = vld [vmem:[%s437 + $0x60] sm:$0xff]
        %v963 = vld [vmem:[%s437 + $0x68] sm:$0xff]
        %v964 = vld [vmem:[%s437 + $0x70] sm:$0xff]
        %v965 = vld [vmem:[%s437 + $0x78] sm:$0xff]
        %v966 = vld [vmem:[%s440] sm:$0x1]
        %v968 = vperm.slane %v966, 0
        %970 = vmatpush.msra.mxu0 %v965
        %971 = vmatpush.msra.mxu0 %v964
        %972 = vmatpush.msra.mxu0 %v963
        %973 = vmatpush.msra.mxu0 %v962
        %974 = vmatpush.msra.mxu0 %v961
        %975 = vmatpush.msra.mxu0 %v960
        %976 = vmatpush.msra.mxu0 %v959
        %977 = vmatpush.msra.mxu0 %v958
        %978 = vmatpush.msra.mxu0 %v957
        %979 = vmatpush.msra.mxu0 %v956
        %980 = vmatpush.msra.mxu0 %v955
        %981 = vmatpush.msra.mxu0 %v954
        %982 = vmatpush.msra.mxu0 %v953
        %983 = vmatpush.msra.mxu0 %v952
        %984 = vmatpush.msra.mxu0 %v951
        %985 = vmatpush.msra.mxu0 %v950
        %986 = vmatmul.f32.gmra.mxu0 %v942
        %v987 = vpop.f32.mrf.mxu0
        %v988 = vadd.f32 %v968, %v987
        %989 = vmatmul.f32.gmra.mxu0 %v943
        %v990 = vpop.f32.mrf.mxu0
        %v991 = vadd.f32 %v968, %v990
        %992 = vmatmul.f32.gmra.mxu0 %v944
        %v993 = vpop.f32.mrf.mxu0
        %v994 = vadd.f32 %v968, %v993
        %995 = vmatmul.f32.gmra.mxu0 %v945
        %v996 = vpop.f32.mrf.mxu0
        %v997 = vadd.f32 %v968, %v996
        %998 = vmatmul.f32.gmra.mxu0 %v946
        %v999 = vpop.f32.mrf.mxu0
        %v1000 = vadd.f32 %v968, %v999
        %1001 = vmatmul.f32.gmra.mxu0 %v947
        %v1002 = vpop.f32.mrf.mxu0
        %v1003 = vadd.f32 %v968, %v1002
        %1004 = vmatmul.f32.gmra.mxu0 %v948
        %v1005 = vpop.f32.mrf.mxu0
        %v1006 = vadd.f32 %v968, %v1005
        %1007 = vmatmul.f32.gmra.mxu0 %v949
        %v1008 = vpop.f32.mrf.mxu0
        %v1009 = vadd.f32 %v968, %v1008
        %1010 = vdwg.mxu0
        %v1011 = vmax.f32 %v988, 0.0
        %v1012 = vmax.f32 %v991, 0.0
        %v1013 = vmax.f32 %v994, 0.0
        %v1014 = vmax.f32 %v997, 0.0
        %v1015 = vmax.f32 %v1000, 0.0
        %v1016 = vmax.f32 %v1003, 0.0
        %v1017 = vmax.f32 %v1006, 0.0
        %v1018 = vmax.f32 %v1009, 0.0
        %s1019 = scalar_lea.vmem [#allocation2], %s479
        %1020 = vst [vmem:[%s1019] sm:$0xff] %v1011
        %1021 = vst [vmem:[%s1019 + $0x8] sm:$0xff] %v1012
        %1022 = vst [vmem:[%s1019 + $0x10] sm:$0xff] %v1013
        %1023 = vst [vmem:[%s1019 + $0x18] sm:$0xff] %v1014
        %1024 = vst [vmem:[%s1019 + $0x20] sm:$0xff] %v1015
        %1025 = vst [vmem:[%s1019 + $0x28] sm:$0xff] %v1016
        %1026 = vst [vmem:[%s1019 + $0x30] sm:$0xff] %v1017
        %1027 = vst [vmem:[%s1019 + $0x38] sm:$0xff] %v1018
      $region76: #{gin_forward.1} parent=63 // pred_fallthru
        _
      %p1028 = scmp.eq.s32.totalorder %s35, 1
      %p1029 = scmp.eq.s32.totalorder %s36, 1
      %p1030 = pnand %p1028, %p1029
      %p1031 = pneg %p1030
      // Predicated region
      $region77: #{gin_forward.1} parent=63 // pred_check
        _
      $region78: #{gin_forward.1} parent=63 // pred_check_branch
        %1033 = sbr.rel (%p1030) target = $region80
      $region79: #{gin_forward.1} parent=63 // pred_region
        %v1034 = vld [vmem:[%s3] sm:$0xff]
        %v1035 = vld [vmem:[#allocation2] sm:$0xff]
        %v1036 = vld [vmem:[#allocation2 + $0x8] sm:$0xff]
        %v1037 = vld [vmem:[#allocation2 + $0x10] sm:$0xff]
        %v1038 = vld [vmem:[#allocation2 + $0x18] sm:$0xff]
        %v1039 = vld [vmem:[#allocation2 + $0x20] sm:$0xff]
        %v1040 = vld [vmem:[#allocation2 + $0x28] sm:$0xff]
        %v1041 = vld [vmem:[#allocation2 + $0x30] sm:$0xff]
        %v1042 = vld [vmem:[#allocation2 + $0x38] sm:$0xff]
        %v1043 = vld [vmem:[#allocation2 + $0x40] sm:$0xff]
        %v1044 = vld [vmem:[#allocation2 + $0x48] sm:$0xff]
        %v1045 = vld [vmem:[#allocation2 + $0x50] sm:$0xff]
        %v1046 = vld [vmem:[#allocation2 + $0x58] sm:$0xff]
        %v1047 = vld [vmem:[#allocation2 + $0x60] sm:$0xff]
        %v1048 = vld [vmem:[#allocation2 + $0x68] sm:$0xff]
        %v1049 = vld [vmem:[#allocation2 + $0x70] sm:$0xff]
        %v1050 = vld [vmem:[#allocation2 + $0x78] sm:$0xff]
        %1051 = vmatpush.msra.mxu0 %v1050
        %1052 = vmatpush.msra.mxu0 %v1049
        %1053 = vmatpush.msra.mxu0 %v1048
        %1054 = vmatpush.msra.mxu0 %v1047
        %1055 = vmatpush.msra.mxu0 %v1046
        %1056 = vmatpush.msra.mxu0 %v1045
        %1057 = vmatpush.msra.mxu0 %v1044
        %1058 = vmatpush.msra.mxu0 %v1043
        %1059 = vmatpush.msra.mxu0 %v1042
        %1060 = vmatpush.msra.mxu0 %v1041
        %1061 = vmatpush.msra.mxu0 %v1040
        %1062 = vmatpush.msra.mxu0 %v1039
        %1063 = vmatpush.msra.mxu0 %v1038
        %1064 = vmatpush.msra.mxu0 %v1037
        %1065 = vmatpush.msra.mxu0 %v1036
        %1066 = vmatpush.msra.mxu0 %v1035
        %1067 = vmatmul.f32.gmra.mxu0 %v1034
        %v1068 = vpop.f32.mrf.mxu0
        %v1069 = vadd.f32 0.0, %v1068
        %1070 = vdwg.mxu0
        %v1071 = vld [vmem:[%s8] sm:$0xff]
        %v1072 = vld [vmem:[%s8 + $0x8] sm:$0xff]
        %v1073 = vld [vmem:[%s8 + $0x10] sm:$0xff]
        %v1074 = vld [vmem:[%s8 + $0x18] sm:$0xff]
        %v1075 = vld [vmem:[%s8 + $0x20] sm:$0xff]
        %v1076 = vld [vmem:[%s8 + $0x28] sm:$0xff]
        %v1077 = vld [vmem:[%s8 + $0x30] sm:$0xff]
        %v1078 = vld [vmem:[%s8 + $0x38] sm:$0xff]
        %v1079 = vld [vmem:[%s8 + $0x40] sm:$0xff]
        %v1080 = vld [vmem:[%s8 + $0x48] sm:$0xff]
        %v1081 = vld [vmem:[%s8 + $0x50] sm:$0xff]
        %v1082 = vld [vmem:[%s8 + $0x58] sm:$0xff]
        %v1083 = vld [vmem:[%s8 + $0x60] sm:$0xff]
        %v1084 = vld [vmem:[%s8 + $0x68] sm:$0xff]
        %v1085 = vld [vmem:[%s8 + $0x70] sm:$0xff]
        %v1086 = vld [vmem:[%s8 + $0x78] sm:$0xff]
        %v1087 = vld [vmem:[%s9] sm:$0x1]
        %v1089 = vperm.slane %v1087, 0
        %1091 = vmatpush.msra.mxu0 %v1086
        %1092 = vmatpush.msra.mxu0 %v1085
        %1093 = vmatpush.msra.mxu0 %v1084
        %1094 = vmatpush.msra.mxu0 %v1083
        %1095 = vmatpush.msra.mxu0 %v1082
        %1096 = vmatpush.msra.mxu0 %v1081
        %1097 = vmatpush.msra.mxu0 %v1080
        %1098 = vmatpush.msra.mxu0 %v1079
        %1099 = vmatpush.msra.mxu0 %v1078
        %1100 = vmatpush.msra.mxu0 %v1077
        %1101 = vmatpush.msra.mxu0 %v1076
        %1102 = vmatpush.msra.mxu0 %v1075
        %1103 = vmatpush.msra.mxu0 %v1074
        %1104 = vmatpush.msra.mxu0 %v1073
        %1105 = vmatpush.msra.mxu0 %v1072
        %1106 = vmatpush.msra.mxu0 %v1071
        %1107 = vmatmul.f32.gmra.mxu0 %v1069
        %v1108 = vpop.f32.mrf.mxu0
        %v1109 = vadd.f32 %v1089, %v1108
        %1110 = vdwg.mxu0
        %v1111 = vmax.f32 %v1109, 0.0
        %v1112 = vld [vmem:[%s10] sm:$0xff]
        %v1113 = vld [vmem:[%s10 + $0x8] sm:$0xff]
        %v1114 = vld [vmem:[%s10 + $0x10] sm:$0xff]
        %v1115 = vld [vmem:[%s10 + $0x18] sm:$0xff]
        %v1116 = vld [vmem:[%s10 + $0x20] sm:$0xff]
        %v1117 = vld [vmem:[%s10 + $0x28] sm:$0xff]
        %v1118 = vld [vmem:[%s10 + $0x30] sm:$0xff]
        %v1119 = vld [vmem:[%s10 + $0x38] sm:$0xff]
        %v1120 = vld [vmem:[%s10 + $0x40] sm:$0xff]
        %v1121 = vld [vmem:[%s10 + $0x48] sm:$0xff]
        %v1122 = vld [vmem:[%s10 + $0x50] sm:$0xff]
        %v1123 = vld [vmem:[%s10 + $0x58] sm:$0xff]
        %v1124 = vld [vmem:[%s10 + $0x60] sm:$0xff]
        %v1125 = vld [vmem:[%s10 + $0x68] sm:$0xff]
        %v1126 = vld [vmem:[%s10 + $0x70] sm:$0xff]
        %v1127 = vld [vmem:[%s10 + $0x78] sm:$0xff]
        %v1128 = vld [vmem:[%s11] sm:$0x1]
        %v1130 = vperm.slane %v1128, 0
        %1132 = vmatpush.msra.mxu0 %v1127
        %1133 = vmatpush.msra.mxu0 %v1126
        %1134 = vmatpush.msra.mxu0 %v1125
        %1135 = vmatpush.msra.mxu0 %v1124
        %1136 = vmatpush.msra.mxu0 %v1123
        %1137 = vmatpush.msra.mxu0 %v1122
        %1138 = vmatpush.msra.mxu0 %v1121
        %1139 = vmatpush.msra.mxu0 %v1120
        %1140 = vmatpush.msra.mxu0 %v1119
        %1141 = vmatpush.msra.mxu0 %v1118
        %1142 = vmatpush.msra.mxu0 %v1117
        %1143 = vmatpush.msra.mxu0 %v1116
        %1144 = vmatpush.msra.mxu0 %v1115
        %1145 = vmatpush.msra.mxu0 %v1114
        %1146 = vmatpush.msra.mxu0 %v1113
        %1147 = vmatpush.msra.mxu0 %v1112
        %1148 = vmatmul.f32.gmra.mxu0 %v1111
        %v1149 = vpop.f32.mrf.mxu0
        %v1150 = vadd.f32 %v1130, %v1149
        %1151 = vdwg.mxu0
        %1152 = vst [vmem:[%s12] sm:$0xff] %v1150
      $region80: #{gin_forward.1} parent=63 // pred_fallthru
        _
      // Predicated region
      $region81: #{gin_forward.1} parent=63 // pred_check
        %p1153 = pneg %p307
      $region82: #{gin_forward.1} parent=63 // pred_check_branch
        %1155 = sbr.rel (%p1153) target = $region84
      $region83: #{gin_forward.1} parent=63 // pred_region
        _
      $region84: #{gin_forward.1} parent=63 // pred_fallthru
        _
      // Predicated region
      $region85: #{gin_forward.1} parent=63 // pred_check
        %p1156 = pneg %p307
      $region86: #{gin_forward.1} parent=63 // pred_check_branch
        %1158 = sbr.rel (%p1156) target = $region88
      $region87: #{gin_forward.1} parent=63 // pred_region
        _
      $region88: #{gin_forward.1} parent=63 // pred_fallthru
        _
    $region64: #{gin_forward.1} parent=5 // pred_fallthru
      _
    %p1159 = scmp.le.s32.totalorder 2, %s26
    // Predicated region
    $region89: #{gin_forward.1} parent=5 // pred_check
      %p1160 = pneg %p1159
    $region90: #{gin_forward.1} parent=5 // pred_check_branch
      %1162 = sbr.rel (%p1160) target = $region92
    $region91: #{gin_forward.1} parent=5 // pred_region
      %s1163 = ssub.s32 %s26, 2
    $region92: #{gin_forward.1} parent=5 // pred_fallthru
      _
  $region6: #{gin_forward.1} parent=0 // loop_footer
    %s30 = sadd.s32 1, %s26
  $region7: #{gin_forward.1} parent=0 // loop_footer_branch
    %25 = sbr.rel target = $region3
  $region8: #{gin_forward.1} parent=0 // loop_exit
    _

</llo_original>
